<compile_context>
chip_gen: v7x
topology: tpu7x:2x2x1
jax: 0.10.0
libtpu: 0.0.40
codegen_flags: <defaults>
</compile_context>

<pallas_src>
import jax
import jax.numpy as jnp
from jax.experimental import pallas as pl
from jax.experimental.pallas import tpu as pltpu


# ----------------------------------------------------------------------------- helpers
def _round_up(x, m):
    return (x + m - 1) // m * m


def _vmem_capacity_bytes():
    try:
        return int(pltpu.get_tpu_info().vmem_capacity_bytes)
    except Exception:
        return 64 << 20          # conservative fallback (v7x per-TensorCore VMEM)


def _footprint(tc, ti, T, P, Dp):
    """Approximate per-step VMEM bytes: double-buffered inputs/outputs + f32 slabs."""
    TM, NP = tc * T, ti * P
    bf16, f32 = 2, 4
    b = 0
    b += 2 * 2 * TM * Dp * bf16            # text tile in both layouts, double-buffered
    b += 2 * 2 * NP * Dp * bf16            # image tile in both layouts, double-buffered
    b += 2 * (NP * ti + TM * tc) * f32     # resident indicator matrices (x2 buffers)
    b += 2 * 2 * tc * ti * f32             # sp / stT output blocks, double-buffered
    b += 2 * TM * NP * f32                 # the two f32 similarity slabs (values)
    b += (tc * NP + ti * TM) * f32         # mp / mt reduction values
    return b


def _pick_tiles(C, T, I, P, Dp, budget):
    """Caption tile TC and image tile TI (both divisors)."""
    divs_c = [d for d in range(1, C + 1) if C % d == 0]
    divs_i = [d for d in range(1, I + 1) if I % d == 0]

    # Smallest caption tile reaching ~256 MXU rows (fills the v6e/v7x 256-row MXU);
    # if that collapses the caption grid to 1 step, back off so the 'parallel' grid
    # has >= 2 steps for v7x megacore sharding.
    tc = next((d for d in divs_c if d * T >= 256), C)
    if tc == C and C > 1:
        tc = max(d for d in divs_c if d < C)

    # Largest image tile whose total footprint fits the VMEM budget.
    ti = 1
    for d in divs_i:
        if _footprint(tc, d, T, P, Dp) <= budget:
            ti = d

    # If even (tc, ti) overflows (tiny budget), shrink the caption tile.
    while _footprint(tc, ti, T, P, Dp) > budget and tc > divs_c[0]:
        tc = max(d for d in divs_c if d < tc)
    return tc, ti


# ----------------------------------------------------------------------------- kernel
def _make_scores_kernel(TC, T, TI, P):
    """Per (caption-tile, image-tile) grid step: produce sp [TC,TI] and st^T [TI,TC]."""
    TM, NP = TC * T, TI * P

    def kernel(txt_ref, txtT_ref, img_ref, imgT_ref, pseg_ref, tsegT_ref,
               sp_ref, stT_ref):
        # -- orientation 1: text rows x image cols; token-max is a sublane reduction --
        s = jnp.dot(txt_ref[...], imgT_ref[...],
                    preferred_element_type=jnp.float32)                 # [TM, NP] f32
        mp = jnp.max(s.reshape(TC, T, NP), axis=1)                      # [TC, NP] f32
        # segmented sum over patches via resident 0/1 indicator matmul (MXU)
        sp_ref[...] = jnp.dot(mp, pseg_ref[...],
                              preferred_element_type=jnp.float32)       # [TC, TI]

        # -- orientation 2: image rows x text cols; patch-max is a sublane reduction --
        s2 = jnp.dot(img_ref[...], txtT_ref[...],
                     preferred_element_type=jnp.float32)                # [NP, TM] f32
        mt = jnp.max(s2.reshape(TI, P, TM), axis=1)                     # [TI, TM] f32
        # segmented sum over tokens -> st transposed (wrapper un-transposes once)
        stT_ref[...] = jnp.dot(mt, tsegT_ref[...],
                               preferred_element_type=jnp.float32)      # [TI, TC]

    return kernel


# ----------------------------------------------------------------------------- epilogue
def _colbert_loss_from_scores(sp, st):
    """Tiny softmax / -log(diag + eps) epilogue in plain jnp (exact division)."""
    eps = 1e-8
    streams = []
    for s in (sp, st):                       # image-wise: softmax over captions (dim 0)
        sm = jax.nn.softmax(s, axis=0)
        streams.append(-jnp.mean(jnp.log(jnp.diagonal(sm) + eps)))
    for s in (sp, st):                       # text-wise: softmax over images (dim 1)
        sm = jax.nn.softmax(s, axis=1)
        streams.append(-jnp.mean(jnp.log(jnp.diagonal(sm) + eps)))
    return jnp.mean(jnp.stack(streams))


# ----------------------------------------------------------------------------- wrapper
def colbert_loss_pallas(image_features, text_features,
                        image_embeddings, text_embeddings, logit_scale,
                        caption_tile=None, image_tile=None):
    # image_features / text_features are accepted for API parity; forward() never reads them.
    del image_features, text_features

    C, T, D = text_embeddings.shape
    I, P, D2 = image_embeddings.shape
    assert D == D2
    assert C == I, "diag() in the loss requires a square [c, i] score matrix"

    Dp = _round_up(D, 128)                 # pad contraction dim -> unmasked lanes, zero cost
    cap = _vmem_capacity_bytes()
    budget = min(cap // 2, 48 << 20)
    TC, TI = _pick_tiles(C, T, I, P, Dp, budget)
    if caption_tile is not None:
        TC = caption_tile
    if image_tile is not None:
        TI = image_tile
    assert C % TC == 0 and I % TI == 0, "tiles must divide C and I"
    nC, nI = C // TC, I // TI
    TM, NP = TC * T, TI * P

    # ---- one-time host-side layout work (no per-step reshapes/transposes in-kernel) --
    text2d = text_embeddings.reshape(C * T, D).astype(jnp.float32)
    img2d = image_embeddings.reshape(I * P, D).astype(jnp.float32)
    if Dp != D:
        text2d = jnp.pad(text2d, ((0, 0), (0, Dp - D)))
        img2d = jnp.pad(img2d, ((0, 0), (0, Dp - D)))
    txt_tiled = text2d.reshape(nC, TM, Dp).astype(jnp.bfloat16)        # [nC, TM, Dp]
    txtT_tiled = jnp.swapaxes(txt_tiled, 1, 2)                         # [nC, Dp, TM]
    img_tiled = img2d.reshape(nI, NP, Dp).astype(jnp.bfloat16)         # [nI, NP, Dp]
    imgT_tiled = jnp.swapaxes(img_tiled, 1, 2)                         # [nI, Dp, NP]

    # Grid-invariant 0/1 segment indicators (identical for every tile), built once.
    # Kept in f32: the other matmul operand (mp / mt) is f32, so a bf16 indicator would
    # just be promoted back; segmented sums stay exact.
    pseg = (jnp.arange(NP)[:, None] // P ==
            jnp.arange(TI)[None, :]).astype(jnp.float32)               # [NP, TI]
    tsegT = (jnp.arange(TM)[:, None] // T ==
             jnp.arange(TC)[None, :]).astype(jnp.float32)              # [TM, TC]

    footprint = _footprint(TC, TI, T, P, Dp)
    vmem_limit = int(min(int(cap * 0.9), max(32 << 20, 2 * footprint)))

    flops = nC * nI * (4 * TM * NP * Dp            # two big bf16 matmuls
                       + 2 * TC * NP * TI          # patch-sum indicator matmul
                       + 2 * TI * TM * TC)         # token-sum indicator matmul
    bytes_accessed = nC * nI * (2 * (TM + NP) * Dp * 2        # bf16 text/image tiles (x2 layouts)
                                + (NP * TI + TM * TC) * 4     # indicators
                                + 2 * TC * TI * 4)            # sp + stT blocks

    kernel = _make_scores_kernel(TC, T, TI, P)
    sp_tiled, stT_tiled = pl.pallas_call(
        kernel,
        out_shape=(
            jax.ShapeDtypeStruct((nC, nI, TC, TI), jnp.float32),       # sp blocks
            jax.ShapeDtypeStruct((nC, nI, TI, TC), jnp.float32),       # st^T blocks
        ),
        grid=(nC, nI),
        in_specs=[
            pl.BlockSpec((None, TM, Dp), lambda gi, gj: (gi, 0, 0)),   # text tile
            pl.BlockSpec((None, Dp, TM), lambda gi, gj: (gi, 0, 0)),   # text tile (transposed)
            pl.BlockSpec((None, NP, Dp), lambda gi, gj: (gj, 0, 0)),   # image tile
            pl.BlockSpec((None, Dp, NP), lambda gi, gj: (gj, 0, 0)),   # image tile (transposed)
            pl.BlockSpec((NP, TI), lambda gi, gj: (0, 0)),             # patch indicator (resident)
            pl.BlockSpec((TM, TC), lambda gi, gj: (0, 0)),             # token indicator (resident)
        ],
        out_specs=(
            pl.BlockSpec((None, None, TC, TI), lambda gi, gj: (gi, gj, 0, 0)),
            pl.BlockSpec((None, None, TI, TC), lambda gi, gj: (gi, gj, 0, 0)),
        ),
        compiler_params=pltpu.CompilerParams(
            dimension_semantics=("parallel", "parallel"),
            vmem_limit_bytes=vmem_limit),
        cost_estimate=pl.CostEstimate(flops=flops, transcendentals=0,
                                      bytes_accessed=bytes_accessed),
    )(txt_tiled, txtT_tiled, img_tiled, imgT_tiled, pseg, tsegT)

    # Re-assemble the full [C, I] score matrices (tiny; XLA handles the relayout).
    sp = sp_tiled.transpose(0, 2, 1, 3).reshape(C, I)
    st = stT_tiled.transpose(0, 3, 1, 2).reshape(C, I)

    # logit_scale hoisted fully out of the kernel: CLIP's logit_scale = exp(param) > 0,
    # so scaling commutes with the max/sum reductions (positive scale required).
    scale = jnp.asarray(logit_scale, jnp.float32)
    sp = sp * scale
    st = st * scale

    loss = _colbert_loss_from_scores(sp, st)
    return loss, sp, st


# ----------------------------------------------------------------------------- reference
def colbert_loss_ref(image_embeddings, text_embeddings, logit_scale):
    """Pure-JAX reference mirroring the PyTorch forward (defaults path)."""
    sim = jnp.einsum('ctd,ipd->citp', text_embeddings, image_embeddings,
                     precision=jax.lax.Precision.HIGHEST) * logit_scale
    sp = jnp.max(sim, axis=2).sum(axis=-1)   # amax over t, sum over p -> [c, i]
    st = jnp.max(sim, axis=3).sum(axis=-1)   # amax over p, sum over t -> [c, i]
    losses = []
    for s in (sp, st):
        sm = jax.nn.softmax(s, axis=0)
        losses.append(-jnp.mean(jnp.log(jnp.diagonal(sm) + 1e-8)))
    for s in (sp, st):
        sm = jax.nn.softmax(s, axis=1)
        losses.append(-jnp.mean(jnp.log(jnp.diagonal(sm) + 1e-8)))
    return jnp.mean(jnp.stack(losses)), sp, st


# ----------------------------------------------------------------------------- test
if __name__ == "__main__":
    key = jax.random.PRNGKey(0)
    C, I, T, P, D = 16, 16, 8, 16, 32
    k1, k2, k3, k4 = jax.random.split(key, 4)

    text_embeddings = jax.random.normal(k1, (C, T, D), jnp.float32)
    image_embeddings = jax.random.normal(k2, (I, P, D), jnp.float32)
    # ColBERT-style cosine similarity: L2-normalize per-token / per-patch embeddings.
    text_embeddings = text_embeddings / jnp.linalg.norm(text_embeddings, axis=-1, keepdims=True)
    image_embeddings = image_embeddings / jnp.linalg.norm(image_embeddings, axis=-1, keepdims=True)

    # Unused pooled features (forward() takes them but never reads them).
    image_features = jax.random.normal(k3, (I, D), jnp.float32)
    text_features = jax.random.normal(k4, (C, D), jnp.float32)

    # The module has no learnable parameters; logit_scale is an input (exp(param) > 0).
    logit_scale = jnp.float32(2.5)

    loss, sp, st = colbert_loss_pallas(image_features, text_features,
                                       image_embeddings, text_embeddings, logit_scale)
    jax.block_until_ready((loss, sp, st))

    ref_loss, ref_sp, ref_st = colbert_loss_ref(image_embeddings, text_embeddings, logit_scale)
    # bf16 matmul inputs (f32 accumulate) vs f32 HIGHEST reference -> slightly wider tolerances.
    assert jnp.allclose(sp, ref_sp, atol=5e-2, rtol=5e-2), "max_sim_p mismatch"
    assert jnp.allclose(st, ref_st, atol=5e-2, rtol=5e-2), "max_sim_t mismatch"
    assert jnp.allclose(loss, ref_loss, atol=5e-2, rtol=5e-2), "loss mismatch"

    print("KERNEL_OK")
</pallas_src>

<mosaic_0001>
module attributes {stable_mosaic.version = 11 : i64} {
  func.func @kernel(%arg0: i32, %arg1: i32, %arg2: memref<1x64x128xbf16, #tpu.memory_space<vmem>>, %arg3: memref<1x128x64xbf16, #tpu.memory_space<vmem>>, %arg4: memref<1x256x128xbf16, #tpu.memory_space<vmem>>, %arg5: memref<1x128x256xbf16, #tpu.memory_space<vmem>>, %arg6: memref<256x16xf32, #tpu.memory_space<vmem>>, %arg7: memref<64x8xf32, #tpu.memory_space<vmem>>, %arg8: memref<1x1x8x16xf32, #tpu.memory_space<vmem>>, %arg9: memref<1x1x16x8xf32, #tpu.memory_space<vmem>>) attributes {dimension_semantics = [#tpu.dimension_semantics<parallel>, #tpu.dimension_semantics<parallel>], iteration_bounds = array<i64: 2, 1>, scalar_prefetch = 0 : i64, scratch_operands = 0 : i64, tpu.core_type = #tpu.core_type<tc>, window_params = [{transform_indices = @transform_0, window_bounds = array<i64: 1, 64, 128>}, {transform_indices = @transform_1, window_bounds = array<i64: 1, 128, 64>}, {transform_indices = @transform_2, window_bounds = array<i64: 1, 256, 128>}, {transform_indices = @transform_3, window_bounds = array<i64: 1, 128, 256>}, {pipeline_mode = #tpu.pipeline_mode<synchronous>, transform_indices = @transform_4, window_bounds = array<i64: 256, 16>}, {pipeline_mode = #tpu.pipeline_mode<synchronous>, transform_indices = @transform_5, window_bounds = array<i64: 64, 8>}, {transform_indices = @transform_6, window_bounds = array<i64: 1, 1, 8, 16>}, {transform_indices = @transform_7, window_bounds = array<i64: 1, 1, 16, 8>}]} {
    %c0 = arith.constant 0 : index
    %c0_0 = arith.constant 0 : index
    %c0_1 = arith.constant 0 : index
    %0 = vector.load %arg2[%c0, %c0_0, %c0_1] : memref<1x64x128xbf16, #tpu.memory_space<vmem>>, vector<1x64x128xbf16>
    %1 = vector.shape_cast %0 : vector<1x64x128xbf16> to vector<64x128xbf16>
    %c0_2 = arith.constant 0 : index
    %c0_3 = arith.constant 0 : index
    %c0_4 = arith.constant 0 : index
    %2 = vector.load %arg5[%c0_2, %c0_3, %c0_4] : memref<1x128x256xbf16, #tpu.memory_space<vmem>>, vector<1x128x256xbf16>
    %3 = vector.shape_cast %2 : vector<1x128x256xbf16> to vector<128x256xbf16>
    %cst = arith.constant dense<0.000000e+00> : vector<64x256xf32>
    %4 = tpu.matmul %1, %3, %cst {dimension_numbers = #tpu.dot_dimension_numbers<[1], [0], [0], [1], [0, 0, 1, 1], [], []>} : vector<64x128xbf16>, vector<128x256xbf16>, vector<64x256xf32> -> vector<64x256xf32>
    %5 = vector.shape_cast %4 : vector<64x256xf32> to vector<8x8x256xf32>
    %cst_5 = arith.constant dense<0xFF800000> : vector<8x256xf32>
    %6 = vector.multi_reduction <maximumf>, %5, %cst_5 [1] : vector<8x8x256xf32> to vector<8x256xf32>
    %c0_6 = arith.constant 0 : index
    %c0_7 = arith.constant 0 : index
    %7 = vector.load %arg6[%c0_6, %c0_7] : memref<256x16xf32, #tpu.memory_space<vmem>>, vector<256x16xf32>
    %cst_8 = arith.constant dense<0.000000e+00> : vector<8x16xf32>
    %8 = tpu.matmul %6, %7, %cst_8 {dimension_numbers = #tpu.dot_dimension_numbers<[1], [0], [0], [1], [0, 0, 1, 1], [], []>} : vector<8x256xf32>, vector<256x16xf32>, vector<8x16xf32> -> vector<8x16xf32>
    %c0_9 = arith.constant 0 : index
    %c0_10 = arith.constant 0 : index
    %c0_11 = arith.constant 0 : index
    %c0_12 = arith.constant 0 : index
    %9 = vector.load %arg8[%c0_9, %c0_10, %c0_11, %c0_12] : memref<1x1x8x16xf32, #tpu.memory_space<vmem>>, vector<1x1x8x16xf32>
    %10 = vector.shape_cast %9 : vector<1x1x8x16xf32> to vector<8x16xf32>
    %11 = vector.shape_cast %8 : vector<8x16xf32> to vector<1x1x8x16xf32>
    tpu.vector_store %arg8[%c0_9, %c0_10, %c0_11, %c0_12], %11 {strides = array<i32>} : memref<1x1x8x16xf32, #tpu.memory_space<vmem>>, vector<1x1x8x16xf32>,
    %c0_13 = arith.constant 0 : index
    %c0_14 = arith.constant 0 : index
    %c0_15 = arith.constant 0 : index
    %12 = vector.load %arg4[%c0_13, %c0_14, %c0_15] : memref<1x256x128xbf16, #tpu.memory_space<vmem>>, vector<1x256x128xbf16>
    %13 = vector.shape_cast %12 : vector<1x256x128xbf16> to vector<256x128xbf16>
    %c0_16 = arith.constant 0 : index
    %c0_17 = arith.constant 0 : index
    %c0_18 = arith.constant 0 : index
    %14 = vector.load %arg3[%c0_16, %c0_17, %c0_18] : memref<1x128x64xbf16, #tpu.memory_space<vmem>>, vector<1x128x64xbf16>
    %15 = vector.shape_cast %14 : vector<1x128x64xbf16> to vector<128x64xbf16>
    %cst_19 = arith.constant dense<0.000000e+00> : vector<256x64xf32>
    %16 = tpu.matmul %13, %15, %cst_19 {dimension_numbers = #tpu.dot_dimension_numbers<[1], [0], [0], [1], [0, 0, 1, 1], [], []>} : vector<256x128xbf16>, vector<128x64xbf16>, vector<256x64xf32> -> vector<256x64xf32>
    %17 = vector.shape_cast %16 : vector<256x64xf32> to vector<16x16x64xf32>
    %cst_20 = arith.constant dense<0xFF800000> : vector<16x64xf32>
    %18 = vector.multi_reduction <maximumf>, %17, %cst_20 [1] : vector<16x16x64xf32> to vector<16x64xf32>
    %c0_21 = arith.constant 0 : index
    %c0_22 = arith.constant 0 : index
    %19 = vector.load %arg7[%c0_21, %c0_22] : memref<64x8xf32, #tpu.memory_space<vmem>>, vector<64x8xf32>
    %cst_23 = arith.constant dense<0.000000e+00> : vector<16x8xf32>
    %20 = tpu.matmul %18, %19, %cst_23 {dimension_numbers = #tpu.dot_dimension_numbers<[1], [0], [0], [1], [0, 0, 1, 1], [], []>} : vector<16x64xf32>, vector<64x8xf32>, vector<16x8xf32> -> vector<16x8xf32>
    %c0_24 = arith.constant 0 : index
    %c0_25 = arith.constant 0 : index
    %c0_26 = arith.constant 0 : index
    %c0_27 = arith.constant 0 : index
    %21 = vector.load %arg9[%c0_24, %c0_25, %c0_26, %c0_27] : memref<1x1x16x8xf32, #tpu.memory_space<vmem>>, vector<1x1x16x8xf32>
    %22 = vector.shape_cast %21 : vector<1x1x16x8xf32> to vector<16x8xf32>
    %23 = vector.shape_cast %20 : vector<16x8xf32> to vector<1x1x16x8xf32>
    tpu.vector_store %arg9[%c0_24, %c0_25, %c0_26, %c0_27], %23 {strides = array<i32>} : memref<1x1x16x8xf32, #tpu.memory_space<vmem>>, vector<1x1x16x8xf32>,
    return
  }
  func.func @transform_0(%arg0: i32, %arg1: i32) -> (i32, i32, i32) {
    %c0_i32 = arith.constant 0 : i32
    %c0_i32_0 = arith.constant 0 : i32
    %c0_i32_1 = arith.constant 0 : i32
    return %arg0, %c0_i32, %c0_i32_0 : i32, i32, i32
  }
  func.func @transform_1(%arg0: i32, %arg1: i32) -> (i32, i32, i32) {
    %c0_i32 = arith.constant 0 : i32
    %c0_i32_0 = arith.constant 0 : i32
    %c0_i32_1 = arith.constant 0 : i32
    return %arg0, %c0_i32, %c0_i32_0 : i32, i32, i32
  }
  func.func @transform_2(%arg0: i32, %arg1: i32) -> (i32, i32, i32) {
    %c0_i32 = arith.constant 0 : i32
    %c0_i32_0 = arith.constant 0 : i32
    %c0_i32_1 = arith.constant 0 : i32
    return %arg1, %c0_i32, %c0_i32_0 : i32, i32, i32
  }
  func.func @transform_3(%arg0: i32, %arg1: i32) -> (i32, i32, i32) {
    %c0_i32 = arith.constant 0 : i32
    %c0_i32_0 = arith.constant 0 : i32
    %c0_i32_1 = arith.constant 0 : i32
    return %arg1, %c0_i32, %c0_i32_0 : i32, i32, i32
  }
  func.func @transform_4(%arg0: i32, %arg1: i32) -> (i32, i32) {
    %c0_i32 = arith.constant 0 : i32
    %c0_i32_0 = arith.constant 0 : i32
    %c0_i32_1 = arith.constant 0 : i32
    return %c0_i32, %c0_i32_0 : i32, i32
  }
  func.func @transform_5(%arg0: i32, %arg1: i32) -> (i32, i32) {
    %c0_i32 = arith.constant 0 : i32
    %c0_i32_0 = arith.constant 0 : i32
    %c0_i32_1 = arith.constant 0 : i32
    return %c0_i32, %c0_i32_0 : i32, i32
  }
  func.func @transform_6(%arg0: i32, %arg1: i32) -> (i32, i32, i32, i32) {
    %c0_i32 = arith.constant 0 : i32
    %c0_i32_0 = arith.constant 0 : i32
    %c0_i32_1 = arith.constant 0 : i32
    return %arg0, %arg1, %c0_i32, %c0_i32_0 : i32, i32, i32, i32
  }
  func.func @transform_7(%arg0: i32, %arg1: i32) -> (i32, i32, i32, i32) {
    %c0_i32 = arith.constant 0 : i32
    %c0_i32_0 = arith.constant 0 : i32
    %c0_i32_1 = arith.constant 0 : i32
    return %arg0, %arg1, %c0_i32, %c0_i32_0 : i32, i32, i32, i32
  }
}

</mosaic_0001>

<llo_original>
// kernel: tpu_custom_call.1
$region0: #{tpu_custom_call.1}
  #allocation0 [shape = 'u32[]', space=smem, size = 0x4, offset = 0x4, fixed_abs, tag = 'smem constant byte address 0x4 - core index']
  #allocation1 [shape = 'u32[144,128]{1,0:T(1,128)}', space=vmem, size = 0x12000, scoped, tag = 'internal scratch']
  %s0 = inlined_call_operand.vmem [shape: bf16[2,64,128], index: 0, kind: input, shape index: {}]
  %s1 = inlined_call_operand.vmem [shape: bf16[2,128,64], index: 1, kind: input, shape index: {}]
  %s2 = inlined_call_operand.vmem [shape: bf16[1,256,128], index: 2, kind: input, shape index: {}]
  %s3 = inlined_call_operand.vmem [shape: bf16[1,128,256], index: 3, kind: input, shape index: {}]
  %s4 = inlined_call_operand.vmem [shape: f32[256,16], index: 4, kind: input, shape index: {}]
  %s5 = inlined_call_operand.vmem [shape: f32[64,8], index: 5, kind: input, shape index: {}]
  %s6 = inlined_call_operand.hbm [shape: f32[2,1,8,16], index: 6, kind: output, shape index: {0}]
  %s7 = inlined_call_operand.vmem [shape: f32[2,1,16,8], index: 7, kind: output, shape index: {1}]
  %8 = xla_tuple %s6, %s7
  %s9 = sld [smem:[#allocation0]]
  $region65: #{tpu_custom_call.1} parent=0
    _
  %s11 = ssub.s32 1, %s9
  %s12 = scalar_select 0, %s11, %s9
  $region1: #{tpu_custom_call.1} parent=0
    #allocation2 [shape = 'u8[8192]{0}', space=vmem, size = 0x2000, scoped, tag = 'output window, operand 0']
    #allocation3 [shape = 's32[2]{0}', space=sflag, size = 0x8, scoped, tag = 'scoped memory for tpu_custom_call.1']
    %13 = vsyncpa [#allocation3], 0
    %s14 = scalar_lea.sflag [#allocation3], 1
    %15 = vsyncpa %s14, 0
    loop: start=0, step=1, limit=4
    $region2: #{tpu_custom_call.1} parent=1 // loop_pre_header
      _
    $region3: #{tpu_custom_call.1} parent=1 // loop_header
      %s17 = sphi 0, %s21
      %p18 = scmp.ge.s32.totalorder %s17, 4
      %s24 = sphi 0, %s36
      %s25 = sphi 0, %s32
      %s26 = sphi 0, %s24
      %s27 = sphi 0, %s25
      %s28 = sphi 0, %s26
      %s29 = sphi 0, %s27
      %s39 = sphi 0, %s41
      %s42 = sphi 0, %s39
      %s43 = sphi 0, %s42
      %s59 = sphi 0, %s43
      %s65 = sphi 0, %s67
      %s68 = sphi 0, %s65
      %s69 = sphi 0, %s68
      %s85 = sphi 0, %s69
      %s91 = sphi 0, %s93
      %s94 = sphi 0, %s91
      %s95 = sphi 0, %s94
      %s111 = sphi 0, %s95
      %s117 = sphi 0, %s119
      %s120 = sphi 0, %s117
      %s121 = sphi 0, %s120
      %s137 = sphi 0, %s121
      %s141 = sphi 0, %s141
      %s143 = sphi 0, %s141
      %s144 = sphi 0, %s143
      %s158 = sphi 0, %s144
      %s162 = sphi 0, %s162
      %s164 = sphi 0, %s162
      %s165 = sphi 0, %s164
      %s179 = sphi 0, %s165
      %s187 = sphi 0, %s189
      %s190 = sphi 0, %s187
      %s191 = sphi 0, %s190
      %s207 = sphi 0, %s191
      %s215 = sphi 0, %s217
      %s218 = sphi 0, %s215
      %s219 = sphi 0, %s218
      %s235 = sphi 0, %s219
    $region4: #{tpu_custom_call.1} parent=1 // loop_header_branch
      %20 = sbr.rel (%p18) target = $region8
    $region5: #{tpu_custom_call.1} parent=1 // loop_body
      %s22 = ssub.s32 %s17, 1
      %s23 = ssub.s32 %s17, 2
      %s30 = sadd.s32 1, %s25
      %p31 = scmp.ge.s32.totalorder %s30, 1
      %s32 = scalar_select %p31, 0, %s30
      %s33 = sadd.s32 1, %s24
      %s34 = scalar_select %p31, %s33, %s24
      %p35 = scmp.ge.s32.totalorder %s34, 2
      %s36 = scalar_select %p35, 0, %s34
      %s37 = ssub.s32 %s24, %s36
      %p38 = scmp.eq.s32.totalorder %s37, 0
      %s40 = sadd.s32 %s39, 1
      %s41 = scalar_select %p38, %s39, %s40
      %p44 = pneg %p38
      %p45 = scmp.eq.s32.totalorder %s17, 1
      %p46 = por %p44, %p45
      %p47 = scmp.ne.s32.totalorder %s39, %s42
      %p48 = scmp.eq.s32.totalorder %s17, 0
      %p49 = por %p47, %p48
      %p50 = scmp.ne.s32.totalorder %s39, %s42
      %p51 = scmp.eq.s32.totalorder %s22, 1
      %p52 = por %p50, %p51
      %p53 = scmp.ne.s32.totalorder %s42, %s43
      %p54 = scmp.eq.s32.totalorder %s22, 0
      %p55 = por %p53, %p54
      %p56 = scmp.ne.s32.totalorder %s42, %s43
      %p57 = scmp.eq.s32.totalorder %s23, 1
      %p58 = por %p56, %p57
      %p60 = scmp.ne.s32.totalorder %s43, %s59
      %p61 = scmp.eq.s32.totalorder %s23, 0
      %p62 = por %p60, %p61
      %s63 = ssub.s32 %s24, %s36
      %p64 = scmp.eq.s32.totalorder %s63, 0
      %s66 = sadd.s32 %s65, 1
      %s67 = scalar_select %p64, %s65, %s66
      %p70 = pneg %p64
      %p71 = scmp.eq.s32.totalorder %s17, 1
      %p72 = por %p70, %p71
      %p73 = scmp.ne.s32.totalorder %s65, %s68
      %p74 = scmp.eq.s32.totalorder %s17, 0
      %p75 = por %p73, %p74
      %p76 = scmp.ne.s32.totalorder %s65, %s68
      %p77 = scmp.eq.s32.totalorder %s22, 1
      %p78 = por %p76, %p77
      %p79 = scmp.ne.s32.totalorder %s68, %s69
      %p80 = scmp.eq.s32.totalorder %s22, 0
      %p81 = por %p79, %p80
      %p82 = scmp.ne.s32.totalorder %s68, %s69
      %p83 = scmp.eq.s32.totalorder %s23, 1
      %p84 = por %p82, %p83
      %p86 = scmp.ne.s32.totalorder %s69, %s85
      %p87 = scmp.eq.s32.totalorder %s23, 0
      %p88 = por %p86, %p87
      %s89 = ssub.s32 %s25, %s32
      %p90 = scmp.eq.s32.totalorder %s89, 0
      %s92 = sadd.s32 %s91, 1
      %s93 = scalar_select %p90, %s91, %s92
      %p96 = pneg %p90
      %p97 = scmp.eq.s32.totalorder %s17, 1
      %p98 = por %p96, %p97
      %p99 = scmp.ne.s32.totalorder %s91, %s94
      %p100 = scmp.eq.s32.totalorder %s17, 0
      %p101 = por %p99, %p100
      %p102 = scmp.ne.s32.totalorder %s91, %s94
      %p103 = scmp.eq.s32.totalorder %s22, 1
      %p104 = por %p102, %p103
      %p105 = scmp.ne.s32.totalorder %s94, %s95
      %p106 = scmp.eq.s32.totalorder %s22, 0
      %p107 = por %p105, %p106
      %p108 = scmp.ne.s32.totalorder %s94, %s95
      %p109 = scmp.eq.s32.totalorder %s23, 1
      %p110 = por %p108, %p109
      %p112 = scmp.ne.s32.totalorder %s95, %s111
      %p113 = scmp.eq.s32.totalorder %s23, 0
      %p114 = por %p112, %p113
      %s115 = ssub.s32 %s25, %s32
      %p116 = scmp.eq.s32.totalorder %s115, 0
      %s118 = sadd.s32 %s117, 1
      %s119 = scalar_select %p116, %s117, %s118
      %p122 = pneg %p116
      %p123 = scmp.eq.s32.totalorder %s17, 1
      %p124 = por %p122, %p123
      %p125 = scmp.ne.s32.totalorder %s117, %s120
      %p126 = scmp.eq.s32.totalorder %s17, 0
      %p127 = por %p125, %p126
      %p128 = scmp.ne.s32.totalorder %s117, %s120
      %p129 = scmp.eq.s32.totalorder %s22, 1
      %p130 = por %p128, %p129
      %p131 = scmp.ne.s32.totalorder %s120, %s121
      %p132 = scmp.eq.s32.totalorder %s22, 0
      %p133 = por %p131, %p132
      %p134 = scmp.ne.s32.totalorder %s120, %s121
      %p135 = scmp.eq.s32.totalorder %s23, 1
      %p136 = por %p134, %p135
      %p138 = scmp.ne.s32.totalorder %s121, %s137
      %p139 = scmp.eq.s32.totalorder %s23, 0
      %p140 = por %p138, %p139
      %s142 = sadd.s32 %s141, 1
      %p145 = scmp.eq.s32.totalorder %s17, 1
      %p146 = scmp.ne.s32.totalorder %s141, %s143
      %p147 = scmp.eq.s32.totalorder %s17, 0
      %p148 = por %p146, %p147
      %p149 = scmp.ne.s32.totalorder %s141, %s143
      %p150 = scmp.eq.s32.totalorder %s22, 1
      %p151 = por %p149, %p150
      %p152 = scmp.ne.s32.totalorder %s143, %s144
      %p153 = scmp.eq.s32.totalorder %s22, 0
      %p154 = por %p152, %p153
      %p155 = scmp.ne.s32.totalorder %s143, %s144
      %p156 = scmp.eq.s32.totalorder %s23, 1
      %p157 = por %p155, %p156
      %p159 = scmp.ne.s32.totalorder %s144, %s158
      %p160 = scmp.eq.s32.totalorder %s23, 0
      %p161 = por %p159, %p160
      %s163 = sadd.s32 %s162, 1
      %p166 = scmp.eq.s32.totalorder %s17, 1
      %p167 = scmp.ne.s32.totalorder %s162, %s164
      %p168 = scmp.eq.s32.totalorder %s17, 0
      %p169 = por %p167, %p168
      %p170 = scmp.ne.s32.totalorder %s162, %s164
      %p171 = scmp.eq.s32.totalorder %s22, 1
      %p172 = por %p170, %p171
      %p173 = scmp.ne.s32.totalorder %s164, %s165
      %p174 = scmp.eq.s32.totalorder %s22, 0
      %p175 = por %p173, %p174
      %p176 = scmp.ne.s32.totalorder %s164, %s165
      %p177 = scmp.eq.s32.totalorder %s23, 1
      %p178 = por %p176, %p177
      %p180 = scmp.ne.s32.totalorder %s165, %s179
      %p181 = scmp.eq.s32.totalorder %s23, 0
      %p182 = por %p180, %p181
      %s183 = ssub.s32 %s24, %s36
      %s184 = ssub.s32 %s25, %s32
      %s185 = sor.u32 %s183, %s184
      %p186 = scmp.eq.s32.totalorder %s185, 0
      %s188 = sadd.s32 %s187, 1
      %s189 = scalar_select %p186, %s187, %s188
      %p192 = pneg %p186
      %p193 = scmp.eq.s32.totalorder %s17, 1
      %p194 = por %p192, %p193
      %p195 = scmp.ne.s32.totalorder %s187, %s190
      %p196 = scmp.eq.s32.totalorder %s17, 0
      %p197 = por %p195, %p196
      %p198 = scmp.ne.s32.totalorder %s187, %s190
      %p199 = scmp.eq.s32.totalorder %s22, 1
      %p200 = por %p198, %p199
      %p201 = scmp.ne.s32.totalorder %s190, %s191
      %p202 = scmp.eq.s32.totalorder %s22, 0
      %p203 = por %p201, %p202
      %p204 = scmp.ne.s32.totalorder %s190, %s191
      %p205 = scmp.eq.s32.totalorder %s23, 1
      %p206 = por %p204, %p205
      %p208 = scmp.ne.s32.totalorder %s191, %s207
      %p209 = scmp.eq.s32.totalorder %s23, 0
      %p210 = por %p208, %p209
      %s211 = ssub.s32 %s24, %s36
      %s212 = ssub.s32 %s25, %s32
      %s213 = sor.u32 %s211, %s212
      %p214 = scmp.eq.s32.totalorder %s213, 0
      %s216 = sadd.s32 %s215, 1
      %s217 = scalar_select %p214, %s215, %s216
      %p220 = pneg %p214
      %p221 = scmp.eq.s32.totalorder %s17, 1
      %p222 = por %p220, %p221
      %p223 = scmp.ne.s32.totalorder %s215, %s218
      %p224 = scmp.eq.s32.totalorder %s17, 0
      %p225 = por %p223, %p224
      %p226 = scmp.ne.s32.totalorder %s215, %s218
      %p227 = scmp.eq.s32.totalorder %s22, 1
      %p228 = por %p226, %p227
      %p229 = scmp.ne.s32.totalorder %s218, %s219
      %p230 = scmp.eq.s32.totalorder %s22, 0
      %p231 = por %p229, %p230
      %p232 = scmp.ne.s32.totalorder %s218, %s219
      %p233 = scmp.eq.s32.totalorder %s23, 1
      %p234 = por %p232, %p233
      %p236 = scmp.ne.s32.totalorder %s219, %s235
      %p237 = scmp.eq.s32.totalorder %s23, 0
      %p238 = por %p236, %p237
      %p239 = scmp.le.s32.totalorder 1, %s17
      %p240 = scmp.lt.s32.totalorder %s17, 3
      %p241 = pnand %p239, %p240
      %p242 = pneg %p241
      // Predicated region
      $region9: #{tpu_custom_call.1} parent=5 // pred_check
        _
      $region10: #{tpu_custom_call.1} parent=5 // pred_check_branch
        %244 = sbr.rel (%p241) target = $region12
      $region11: #{tpu_custom_call.1} parent=5 // pred_region
        %s245 = ssub.s32 %s17, 1
        // Predicated region
        $region13: #{tpu_custom_call.1} parent=11 // pred_check
          %p246 = pneg %p107
        $region14: #{tpu_custom_call.1} parent=11 // pred_check_branch
          %248 = sbr.rel (%p246) target = $region16
        $region15: #{tpu_custom_call.1} parent=11 // pred_region
          %p249 = scmp.lt.s32.totalorder %s27, 0
          %s250 = scalar_select %p249, %s27, 0
          %s251 = smul.addr %s250, 32
          %s252 = smul.addr %s251, 4
          %s253 = scalar_lea.vmem %s2, %s252
        $region16: #{tpu_custom_call.1} parent=11 // pred_fallthru
          _
        // Predicated region
        $region17: #{tpu_custom_call.1} parent=11 // pred_check
          %p254 = pneg %p133
        $region18: #{tpu_custom_call.1} parent=11 // pred_check_branch
          %256 = sbr.rel (%p254) target = $region20
        $region19: #{tpu_custom_call.1} parent=11 // pred_region
          %p257 = scmp.lt.s32.totalorder %s27, 0
          %s258 = scalar_select %p257, %s27, 0
          %s259 = smul.addr %s258, 32
          %s260 = smul.addr %s259, 4
          %s261 = scalar_lea.vmem %s3, %s260
        $region20: #{tpu_custom_call.1} parent=11 // pred_fallthru
          _
        // Predicated region
        $region21: #{tpu_custom_call.1} parent=11 // pred_check
          %p262 = pneg %p154
        $region22: #{tpu_custom_call.1} parent=11 // pred_check_branch
          %264 = sbr.rel (%p262) target = $region24
        $region23: #{tpu_custom_call.1} parent=11 // pred_region
          _
        $region24: #{tpu_custom_call.1} parent=11 // pred_fallthru
          _
        // Predicated region
        $region25: #{tpu_custom_call.1} parent=11 // pred_check
          %p265 = pneg %p175
        $region26: #{tpu_custom_call.1} parent=11 // pred_check_branch
          %267 = sbr.rel (%p265) target = $region28
        $region27: #{tpu_custom_call.1} parent=11 // pred_region
          _
        $region28: #{tpu_custom_call.1} parent=11 // pred_fallthru
          _
      $region12: #{tpu_custom_call.1} parent=5 // pred_fallthru
        _
      %p268 = scmp.lt.s32.totalorder %s17, 2
      // Predicated region
      $region29: #{tpu_custom_call.1} parent=5 // pred_check
        %p269 = pneg %p268
      $region30: #{tpu_custom_call.1} parent=5 // pred_check_branch
        %271 = sbr.rel (%p269) target = $region32
      $region31: #{tpu_custom_call.1} parent=5 // pred_region
        // Predicated region
        $region33: #{tpu_custom_call.1} parent=31 // pred_check
          %p272 = pneg %p49
        $region34: #{tpu_custom_call.1} parent=31 // pred_check_branch
          %274 = sbr.rel (%p272) target = $region36
        $region35: #{tpu_custom_call.1} parent=31 // pred_region
          %p275 = scmp.lt.s32.totalorder %s24, 1
          %s276 = scalar_select %p275, %s24, 1
          %s277 = smul.addr %s276, 8
          %s278 = smul.addr %s277, 4
          %s279 = scalar_lea.vmem %s0, %s278
        $region36: #{tpu_custom_call.1} parent=31 // pred_fallthru
          _
        // Predicated region
        $region37: #{tpu_custom_call.1} parent=31 // pred_check
          %p280 = pneg %p75
        $region38: #{tpu_custom_call.1} parent=31 // pred_check_branch
          %282 = sbr.rel (%p280) target = $region40
        $region39: #{tpu_custom_call.1} parent=31 // pred_region
          %p283 = scmp.lt.s32.totalorder %s24, 1
          %s284 = scalar_select %p283, %s24, 1
          %s285 = smul.addr %s284, 16
          %s286 = smul.addr %s285, 4
          %s287 = scalar_lea.vmem %s1, %s286
        $region40: #{tpu_custom_call.1} parent=31 // pred_fallthru
          _
      $region32: #{tpu_custom_call.1} parent=5 // pred_fallthru
        _
      %p288 = scmp.le.s32.totalorder 1, %s17
      %p289 = scmp.lt.s32.totalorder %s17, 3
      %p290 = pnand %p288, %p289
      %p291 = pneg %p290
      // Predicated region
      $region41: #{tpu_custom_call.1} parent=5 // pred_check
        _
      $region42: #{tpu_custom_call.1} parent=5 // pred_check_branch
        %293 = sbr.rel (%p290) target = $region44
      $region43: #{tpu_custom_call.1} parent=5 // pred_region
        %s294 = ssub.s32 %s17, 1
        %p295 = scmp.lt.s32.totalorder %s26, 1
        %s296 = scalar_select %p295, %s26, 1
        %s297 = smul.addr %s296, 8
        %s298 = smul.addr %s297, 4
        %s299 = scalar_lea.vmem %s0, %s298
        %p300 = pneg %p55
        %p301 = pneg %p52
        %p302 = scmp.lt.s32.totalorder %s26, 1
        %s303 = scalar_select %p302, %s26, 1
        %s304 = smul.addr %s303, 16
        %s305 = smul.addr %s304, 4
        %s306 = scalar_lea.vmem %s1, %s305
        %p307 = pneg %p81
        %p308 = pneg %p78
        %p309 = scmp.lt.s32.totalorder %s27, 0
        %s310 = scalar_select %p309, %s27, 0
        %s311 = smul.addr %s310, 32
        %s312 = smul.addr %s311, 4
        %s313 = scalar_lea.vmem %s2, %s312
        %p314 = pneg %p107
        %p315 = pneg %p104
        %p316 = scmp.lt.s32.totalorder %s27, 0
        %s317 = scalar_select %p316, %s27, 0
        %s318 = smul.addr %s317, 32
        %s319 = smul.addr %s318, 4
        %s320 = scalar_lea.vmem %s3, %s319
        %p321 = pneg %p133
        %p322 = pneg %p130
        %p323 = pneg %p154
        %p324 = pneg %p151
        %p325 = pneg %p175
        %p326 = pneg %p172
        %p327 = pneg %p203
        %p328 = pneg %p200
        %s329 = sand.u32 %s190, 1
        %s330 = scalar_lea.sflag [#allocation3], %s329
        %s331 = sand.u32 %s190, 1
        %s332 = smul.addr %s331, 8
        %s333 = scalar_lea.vmem [#allocation2], %s332
        %p334 = pneg %p231
        %p335 = pneg %p228
        %p336 = scmp.lt.s32.totalorder %s26, 1
        %s337 = scalar_select %p336, %s26, 1
        %p338 = scmp.lt.s32.totalorder %s27, 0
        %s339 = scalar_select %p338, %s27, 0
        %s340 = smul.addr %s339, 2
        %s341 = smul.addr %s337, 2
        %s342 = sadd.s32 %s340, %s341
        %s343 = smul.addr %s342, 8
        %s344 = scalar_lea.vmem %s7, %s343
        %p345 = scmp.lt.s32.totalorder %s26, 1
        %s346 = scalar_select %p345, %s26, 1
        %s347 = smul.addr %s346, 8
        %s348 = smul.addr %s347, 4
        %s349 = scalar_lea.vmem %s0, %s348
        %p350 = scmp.lt.s32.totalorder %s26, 1
        %s351 = scalar_select %p350, %s26, 1
        %s352 = smul.addr %s351, 16
        %s353 = smul.addr %s352, 4
        %s354 = scalar_lea.vmem %s1, %s353
        %p355 = scmp.lt.s32.totalorder %s27, 0
        %s356 = scalar_select %p355, %s27, 0
        %s357 = smul.addr %s356, 32
        %s358 = smul.addr %s357, 4
        %s359 = scalar_lea.vmem %s2, %s358
        %p360 = scmp.lt.s32.totalorder %s27, 0
        %s361 = scalar_select %p360, %s27, 0
        %s362 = smul.addr %s361, 32
        %s363 = smul.addr %s362, 4
        %s364 = scalar_lea.vmem %s3, %s363
        %p365 = scmp.lt.s32.totalorder %s26, 1
        %s366 = scalar_select %p365, %s26, 1
        %p367 = scmp.lt.s32.totalorder %s27, 0
        %s368 = scalar_select %p367, %s27, 0
        %s369 = smul.addr %s368, 2
        %s370 = smul.addr %s366, 2
        %s371 = sadd.s32 %s369, %s370
        %s372 = smul.addr %s371, 8
        %s373 = scalar_lea.vmem %s7, %s372
        %v375 = vld [vmem:[%s349] sm:$0xf]
        %v376 = vld [vmem:[%s349 + $0x4] sm:$0xf]
        %v377 = vld [vmem:[%s349 + $0x8] sm:$0xf]
        %v378 = vld [vmem:[%s349 + $0xc] sm:$0xf]
        %v379 = vld [vmem:[%s349 + $0x10] sm:$0xf]
        %v380 = vld [vmem:[%s349 + $0x14] sm:$0xf]
        %v381 = vld [vmem:[%s349 + $0x18] sm:$0xf]
        %v382 = vld [vmem:[%s349 + $0x1c] sm:$0xf]
        %v383 = vld [vmem:[%s364] sm:$0xff]
        %v384 = vld [vmem:[%s364 + $0x8] sm:$0xff]
        %v385 = vld [vmem:[%s364 + $0x10] sm:$0xff]
        %v386 = vld [vmem:[%s364 + $0x18] sm:$0xff]
        %v387 = vld [vmem:[%s364 + $0x20] sm:$0xff]
        %v388 = vld [vmem:[%s364 + $0x28] sm:$0xff]
        %v389 = vld [vmem:[%s364 + $0x30] sm:$0xff]
        %v390 = vld [vmem:[%s364 + $0x38] sm:$0xff]
        %v391 = vld [vmem:[%s364 + $0x40] sm:$0xff]
        %v392 = vld [vmem:[%s364 + $0x48] sm:$0xff]
        %v393 = vld [vmem:[%s364 + $0x50] sm:$0xff]
        %v394 = vld [vmem:[%s364 + $0x58] sm:$0xff]
        %v395 = vld [vmem:[%s364 + $0x60] sm:$0xff]
        %v396 = vld [vmem:[%s364 + $0x68] sm:$0xff]
        %v397 = vld [vmem:[%s364 + $0x70] sm:$0xff]
        %v398 = vld [vmem:[%s364 + $0x78] sm:$0xff]
        %v407 = vunpack.c.l.b16 %v375
        %v408 = vunpack.c.l.b16 %v376
        %v409 = vunpack.c.l.b16 %v377
        %v410 = vunpack.c.l.b16 %v378
        %v411 = vunpack.c.l.b16 %v379
        %v412 = vunpack.c.l.b16 %v380
        %v413 = vunpack.c.l.b16 %v381
        %v414 = vunpack.c.l.b16 %v382
        %v415 = vpack.c.b16 %v408, %v407
        %v416 = vpack.c.b16 %v410, %v409
        %v417 = vpack.c.b16 %v412, %v411
        %v418 = vpack.c.b16 %v414, %v413
        %v439 = vunpack.c.l.b16 %v383
        %v440 = vunpack.c.h.b16 %v383
        %v441 = vunpack.c.l.b16 %v384
        %v442 = vunpack.c.h.b16 %v384
        %v443 = vunpack.c.l.b16 %v385
        %v444 = vunpack.c.h.b16 %v385
        %v445 = vunpack.c.l.b16 %v386
        %v446 = vunpack.c.h.b16 %v386
        %v447 = vunpack.c.l.b16 %v387
        %v448 = vunpack.c.h.b16 %v387
        %v449 = vunpack.c.l.b16 %v388
        %v450 = vunpack.c.h.b16 %v388
        %v451 = vunpack.c.l.b16 %v389
        %v452 = vunpack.c.h.b16 %v389
        %v453 = vunpack.c.l.b16 %v390
        %v454 = vunpack.c.h.b16 %v390
        %v455 = vunpack.c.l.b16 %v391
        %v456 = vunpack.c.h.b16 %v391
        %v457 = vunpack.c.l.b16 %v392
        %v458 = vunpack.c.h.b16 %v392
        %v459 = vunpack.c.l.b16 %v393
        %v460 = vunpack.c.h.b16 %v393
        %v461 = vunpack.c.l.b16 %v394
        %v462 = vunpack.c.h.b16 %v394
        %v463 = vunpack.c.l.b16 %v395
        %v464 = vunpack.c.h.b16 %v395
        %v465 = vunpack.c.l.b16 %v396
        %v466 = vunpack.c.h.b16 %v396
        %v467 = vunpack.c.l.b16 %v397
        %v468 = vunpack.c.h.b16 %v397
        %v469 = vunpack.c.l.b16 %v398
        %v470 = vunpack.c.h.b16 %v398
        %v471 = vpack.c.b16 %v441, %v439
        %v472 = vpack.c.b16 %v442, %v440
        %v473 = vpack.c.b16 %v445, %v443
        %v474 = vpack.c.b16 %v446, %v444
        %v475 = vpack.c.b16 %v449, %v447
        %v476 = vpack.c.b16 %v450, %v448
        %v477 = vpack.c.b16 %v453, %v451
        %v478 = vpack.c.b16 %v454, %v452
        %v479 = vpack.c.b16 %v457, %v455
        %v480 = vpack.c.b16 %v458, %v456
        %v481 = vpack.c.b16 %v461, %v459
        %v482 = vpack.c.b16 %v462, %v460
        %v483 = vpack.c.b16 %v465, %v463
        %v484 = vpack.c.b16 %v466, %v464
        %v485 = vpack.c.b16 %v469, %v467
        %v486 = vpack.c.b16 %v470, %v468
        %503 = vmatprep.subr.bf16.mxu0 %v472
        %504 = vmatpush1.bf16.msra.mxu0 %v471
        %505 = vmatprep.subr.bf16.mxu0 %v474
        %506 = vmatpush1.bf16.msra.mxu0 %v473
        %507 = vmatprep.subr.bf16.mxu0 %v476
        %508 = vmatpush1.bf16.msra.mxu0 %v475
        %509 = vmatprep.subr.bf16.mxu0 %v478
        %510 = vmatpush1.bf16.msra.mxu0 %v477
        %511 = vmatprep.subr.bf16.mxu0 %v480
        %512 = vmatpush1.bf16.msra.mxu0 %v479
        %513 = vmatprep.subr.bf16.mxu0 %v482
        %514 = vmatpush1.bf16.msra.mxu0 %v481
        %515 = vmatprep.subr.bf16.mxu0 %v484
        %516 = vmatpush1.bf16.msra.mxu0 %v483
        %517 = vmatprep.subr.bf16.mxu0 %v486
        %518 = vmatpush1.bf16.msra.mxu0 %v485
        %519 = vmatprep.subr.bf16.mxu0 0
        %520 = vmatpush1.bf16.msra.mxu0 0
        %521 = vmatprep.subr.bf16.mxu0 0
        %522 = vmatpush1.bf16.msra.mxu0 0
        %523 = vmatprep.subr.bf16.mxu0 0
        %524 = vmatpush1.bf16.msra.mxu0 0
        %525 = vmatprep.subr.bf16.mxu0 0
        %526 = vmatpush1.bf16.msra.mxu0 0
        %527 = vmatprep.subr.bf16.mxu0 0
        %528 = vmatpush1.bf16.msra.mxu0 0
        %529 = vmatprep.subr.bf16.mxu0 0
        %530 = vmatpush1.bf16.msra.mxu0 0
        %531 = vmatprep.subr.bf16.mxu0 0
        %532 = vmatpush1.bf16.msra.mxu0 0
        %533 = vmatprep.subr.bf16.mxu0 0
        %534 = vmatpush1.bf16.msra.mxu0 0
        %535 = vmatprep.mubr.bf16.mxu0 0
        %536 = vmatmul.mubr.bf16.gmra.mrb[0].mxu0 %v415
        %v537 = vpop.f32.mrb[0].mxu0
        %v538 = vadd.f32 0.0, %v537
        %v539 = vpop.f32.mrb[0].mxu0
        %v540 = vadd.f32 0.0, %v539
        %v541 = vpop.f32.mrb[0].mxu0
        %v542 = vadd.f32 0.0, %v541
        %v543 = vpop.f32.mrb[0].mxu0
        %v544 = vadd.f32 0.0, %v543
        %545 = vmatprep.mubr.bf16.mxu0 0
        %546 = vmatmul.mubr.bf16.gmra.mrb[0].mxu0 %v416
        %v547 = vpop.f32.mrb[0].mxu0
        %v548 = vadd.f32 0.0, %v547
        %v549 = vpop.f32.mrb[0].mxu0
        %v550 = vadd.f32 0.0, %v549
        %v551 = vpop.f32.mrb[0].mxu0
        %v552 = vadd.f32 0.0, %v551
        %v553 = vpop.f32.mrb[0].mxu0
        %v554 = vadd.f32 0.0, %v553
        %555 = vmatprep.mubr.bf16.mxu0 0
        %556 = vmatmul.mubr.bf16.gmra.mrb[0].mxu0 %v417
        %v557 = vpop.f32.mrb[0].mxu0
        %v558 = vadd.f32 0.0, %v557
        %v559 = vpop.f32.mrb[0].mxu0
        %v560 = vadd.f32 0.0, %v559
        %v561 = vpop.f32.mrb[0].mxu0
        %v562 = vadd.f32 0.0, %v561
        %v563 = vpop.f32.mrb[0].mxu0
        %v564 = vadd.f32 0.0, %v563
        %565 = vmatprep.mubr.bf16.mxu0 0
        %566 = vmatmul.mubr.bf16.gmra.mrb[0].mxu0 %v418
        %v567 = vpop.f32.mrb[0].mxu0
        %v568 = vadd.f32 0.0, %v567
        %v569 = vpop.f32.mrb[0].mxu0
        %v570 = vadd.f32 0.0, %v569
        %v571 = vpop.f32.mrb[0].mxu0
        %v572 = vadd.f32 0.0, %v571
        %v573 = vpop.f32.mrb[0].mxu0
        %v574 = vadd.f32 0.0, %v573
        %575 = vdwg.mxu0
        %v576 = vrot.slane %v538, 4
        %v577 = vmax.f32 %v538, %v576
        %v578 = vrot.slane %v577, 2
        %v579 = vmax.f32 %v577, %v578
        %v580 = vrot.slane %v579, 1
        %v581 = vmax.f32 %v579, %v580
        %v582 = vrot.slane %v540, 4
        %v583 = vmax.f32 %v540, %v582
        %v584 = vrot.slane %v583, 2
        %v585 = vmax.f32 %v583, %v584
        %v586 = vrot.slane %v585, 1
        %v587 = vmax.f32 %v585, %v586
        %v588 = vrot.slane %v542, 4
        %v589 = vmax.f32 %v542, %v588
        %v590 = vrot.slane %v589, 2
        %v591 = vmax.f32 %v589, %v590
        %v592 = vrot.slane %v591, 1
        %v593 = vmax.f32 %v591, %v592
        %v594 = vrot.slane %v544, 4
        %v595 = vmax.f32 %v544, %v594
        %v596 = vrot.slane %v595, 2
        %v597 = vmax.f32 %v595, %v596
        %v598 = vrot.slane %v597, 1
        %v599 = vmax.f32 %v597, %v598
        %v600 = vrot.slane %v548, 4
        %v601 = vmax.f32 %v548, %v600
        %v602 = vrot.slane %v601, 2
        %v603 = vmax.f32 %v601, %v602
        %v604 = vrot.slane %v603, 1
        %v605 = vmax.f32 %v603, %v604
        %v606 = vrot.slane %v550, 4
        %v607 = vmax.f32 %v550, %v606
        %v608 = vrot.slane %v607, 2
        %v609 = vmax.f32 %v607, %v608
        %v610 = vrot.slane %v609, 1
        %v611 = vmax.f32 %v609, %v610
        %v612 = vrot.slane %v552, 4
        %v613 = vmax.f32 %v552, %v612
        %v614 = vrot.slane %v613, 2
        %v615 = vmax.f32 %v613, %v614
        %v616 = vrot.slane %v615, 1
        %v617 = vmax.f32 %v615, %v616
        %v618 = vrot.slane %v554, 4
        %v619 = vmax.f32 %v554, %v618
        %v620 = vrot.slane %v619, 2
        %v621 = vmax.f32 %v619, %v620
        %v622 = vrot.slane %v621, 1
        %v623 = vmax.f32 %v621, %v622
        %v624 = vrot.slane %v558, 4
        %v625 = vmax.f32 %v558, %v624
        %v626 = vrot.slane %v625, 2
        %v627 = vmax.f32 %v625, %v626
        %v628 = vrot.slane %v627, 1
        %v629 = vmax.f32 %v627, %v628
        %v630 = vrot.slane %v560, 4
        %v631 = vmax.f32 %v560, %v630
        %v632 = vrot.slane %v631, 2
        %v633 = vmax.f32 %v631, %v632
        %v634 = vrot.slane %v633, 1
        %v635 = vmax.f32 %v633, %v634
        %v636 = vrot.slane %v562, 4
        %v637 = vmax.f32 %v562, %v636
        %v638 = vrot.slane %v637, 2
        %v639 = vmax.f32 %v637, %v638
        %v640 = vrot.slane %v639, 1
        %v641 = vmax.f32 %v639, %v640
        %v642 = vrot.slane %v564, 4
        %v643 = vmax.f32 %v564, %v642
        %v644 = vrot.slane %v643, 2
        %v645 = vmax.f32 %v643, %v644
        %v646 = vrot.slane %v645, 1
        %v647 = vmax.f32 %v645, %v646
        %v648 = vrot.slane %v568, 4
        %v649 = vmax.f32 %v568, %v648
        %v650 = vrot.slane %v649, 2
        %v651 = vmax.f32 %v649, %v650
        %v652 = vrot.slane %v651, 1
        %v653 = vmax.f32 %v651, %v652
        %v654 = vrot.slane %v570, 4
        %v655 = vmax.f32 %v570, %v654
        %v656 = vrot.slane %v655, 2
        %v657 = vmax.f32 %v655, %v656
        %v658 = vrot.slane %v657, 1
        %v659 = vmax.f32 %v657, %v658
        %v660 = vrot.slane %v572, 4
        %v661 = vmax.f32 %v572, %v660
        %v662 = vrot.slane %v661, 2
        %v663 = vmax.f32 %v661, %v662
        %v664 = vrot.slane %v663, 1
        %v665 = vmax.f32 %v663, %v664
        %v666 = vrot.slane %v574, 4
        %v667 = vmax.f32 %v574, %v666
        %v668 = vrot.slane %v667, 2
        %v669 = vmax.f32 %v667, %v668
        %v670 = vrot.slane %v669, 1
        %v671 = vmax.f32 %v669, %v670
        %v672 = vld [vmem:[%s4] sm:$0xff]
        %v673 = vld [vmem:[%s4 + $0x8] sm:$0xff]
        %v674 = vld [vmem:[%s4 + $0x10] sm:$0xff]
        %v675 = vld [vmem:[%s4 + $0x18] sm:$0xff]
        %v676 = vld [vmem:[%s4 + $0x20] sm:$0xff]
        %v677 = vld [vmem:[%s4 + $0x28] sm:$0xff]
        %v678 = vld [vmem:[%s4 + $0x30] sm:$0xff]
        %v679 = vld [vmem:[%s4 + $0x38] sm:$0xff]
        %v680 = vld [vmem:[%s4 + $0x40] sm:$0xff]
        %v681 = vld [vmem:[%s4 + $0x48] sm:$0xff]
        %v682 = vld [vmem:[%s4 + $0x50] sm:$0xff]
        %v683 = vld [vmem:[%s4 + $0x58] sm:$0xff]
        %v684 = vld [vmem:[%s4 + $0x60] sm:$0xff]
        %v685 = vld [vmem:[%s4 + $0x68] sm:$0xff]
        %v686 = vld [vmem:[%s4 + $0x70] sm:$0xff]
        %v687 = vld [vmem:[%s4 + $0x78] sm:$0xff]
        %v688 = vld [vmem:[%s4 + $0x80] sm:$0xff]
        %v689 = vld [vmem:[%s4 + $0x88] sm:$0xff]
        %v690 = vld [vmem:[%s4 + $0x90] sm:$0xff]
        %v691 = vld [vmem:[%s4 + $0x98] sm:$0xff]
        %v692 = vld [vmem:[%s4 + $0xa0] sm:$0xff]
        %v693 = vld [vmem:[%s4 + $0xa8] sm:$0xff]
        %v694 = vld [vmem:[%s4 + $0xb0] sm:$0xff]
        %v695 = vld [vmem:[%s4 + $0xb8] sm:$0xff]
        %v696 = vld [vmem:[%s4 + $0xc0] sm:$0xff]
        %v697 = vld [vmem:[%s4 + $0xc8] sm:$0xff]
        %v698 = vld [vmem:[%s4 + $0xd0] sm:$0xff]
        %v699 = vld [vmem:[%s4 + $0xd8] sm:$0xff]
        %v700 = vld [vmem:[%s4 + $0xe0] sm:$0xff]
        %v701 = vld [vmem:[%s4 + $0xe8] sm:$0xff]
        %v702 = vld [vmem:[%s4 + $0xf0] sm:$0xff]
        %v703 = vld [vmem:[%s4 + $0xf8] sm:$0xff]
        %vm720 = vcmask 1041409
        %v721 = vsel %vm720, %v593, %v581
        %vm722 = vcmask 1042434
        %v723 = vsel %vm722, %v605, %v721
        %vm724 = vcmask 1043459
        %v725 = vsel %vm724, %v617, %v723
        %vm726 = vcmask 1044484
        %v727 = vsel %vm726, %v629, %v725
        %vm728 = vcmask 1045509
        %v729 = vsel %vm728, %v641, %v727
        %vm730 = vcmask 1046534
        %v731 = vsel %vm730, %v653, %v729
        %vm732 = vcmask 1047559
        %v733 = vsel %vm732, %v665, %v731
        %v734 = vsel %vm720, %v599, %v587
        %v735 = vsel %vm722, %v611, %v734
        %v736 = vsel %vm724, %v623, %v735
        %v737 = vsel %vm726, %v635, %v736
        %v738 = vsel %vm728, %v647, %v737
        %v739 = vsel %vm730, %v659, %v738
        %v740 = vsel %vm732, %v671, %v739
        %743 = vmatprep.subr.mxu0 0.0
        %744 = vmatpush1.msra.mxu0 %v672
        %745 = vmatprep.subr.mxu0 0.0
        %746 = vmatpush1.msra.mxu0 %v673
        %747 = vmatprep.subr.mxu0 0.0
        %748 = vmatpush1.msra.mxu0 %v674
        %749 = vmatprep.subr.mxu0 0.0
        %750 = vmatpush1.msra.mxu0 %v675
        %751 = vmatprep.subr.mxu0 0.0
        %752 = vmatpush1.msra.mxu0 %v676
        %753 = vmatprep.subr.mxu0 0.0
        %754 = vmatpush1.msra.mxu0 %v677
        %755 = vmatprep.subr.mxu0 0.0
        %756 = vmatpush1.msra.mxu0 %v678
        %757 = vmatprep.subr.mxu0 0.0
        %758 = vmatpush1.msra.mxu0 %v679
        %759 = vmatprep.subr.mxu0 0.0
        %760 = vmatpush1.msra.mxu0 %v680
        %761 = vmatprep.subr.mxu0 0.0
        %762 = vmatpush1.msra.mxu0 %v681
        %763 = vmatprep.subr.mxu0 0.0
        %764 = vmatpush1.msra.mxu0 %v682
        %765 = vmatprep.subr.mxu0 0.0
        %766 = vmatpush1.msra.mxu0 %v683
        %767 = vmatprep.subr.mxu0 0.0
        %768 = vmatpush1.msra.mxu0 %v684
        %769 = vmatprep.subr.mxu0 0.0
        %770 = vmatpush1.msra.mxu0 %v685
        %771 = vmatprep.subr.mxu0 0.0
        %772 = vmatpush1.msra.mxu0 %v686
        %773 = vmatprep.subr.mxu0 0.0
        %774 = vmatpush1.msra.mxu0 %v687
        %775 = vmatprep.subr.mxu0 0.0
        %776 = vmatpush1.msra.mxu0 %v688
        %777 = vmatprep.subr.mxu0 0.0
        %778 = vmatpush1.msra.mxu0 %v689
        %779 = vmatprep.subr.mxu0 0.0
        %780 = vmatpush1.msra.mxu0 %v690
        %781 = vmatprep.subr.mxu0 0.0
        %782 = vmatpush1.msra.mxu0 %v691
        %783 = vmatprep.subr.mxu0 0.0
        %784 = vmatpush1.msra.mxu0 %v692
        %785 = vmatprep.subr.mxu0 0.0
        %786 = vmatpush1.msra.mxu0 %v693
        %787 = vmatprep.subr.mxu0 0.0
        %788 = vmatpush1.msra.mxu0 %v694
        %789 = vmatprep.subr.mxu0 0.0
        %790 = vmatpush1.msra.mxu0 %v695
        %791 = vmatprep.subr.mxu0 0.0
        %792 = vmatpush1.msra.mxu0 %v696
        %793 = vmatprep.subr.mxu0 0.0
        %794 = vmatpush1.msra.mxu0 %v697
        %795 = vmatprep.subr.mxu0 0.0
        %796 = vmatpush1.msra.mxu0 %v698
        %797 = vmatprep.subr.mxu0 0.0
        %798 = vmatpush1.msra.mxu0 %v699
        %799 = vmatprep.subr.mxu0 0.0
        %800 = vmatpush1.msra.mxu0 %v700
        %801 = vmatprep.subr.mxu0 0.0
        %802 = vmatpush1.msra.mxu0 %v701
        %803 = vmatprep.subr.mxu0 0.0
        %804 = vmatpush1.msra.mxu0 %v702
        %805 = vmatprep.subr.mxu0 0.0
        %806 = vmatpush1.msra.mxu0 %v703
        %807 = vmatprep.mubr.f32.mxu0 %v740
        %808 = vmatmul.mubr.f32.gmra.mrb[0].mxu0 %v733
        %v809 = vpop.f32.mrb[0].mxu0
        %v810 = vadd.f32 0.0, %v809
        %v811 = vpop.f32.mrb[0].mxu0
        %812 = vdwg.mxu0
        %vm813 = vcmask 130048
        %814 = vst.msk [vmem:[%s333] sm:$0xff] %vm813, %v810
        %v815 = vld [vmem:[%s359] sm:$0xf]
        %v816 = vld [vmem:[%s359 + $0x4] sm:$0xf]
        %v817 = vld [vmem:[%s359 + $0x8] sm:$0xf]
        %v818 = vld [vmem:[%s359 + $0xc] sm:$0xf]
        %v819 = vld [vmem:[%s359 + $0x10] sm:$0xf]
        %v820 = vld [vmem:[%s359 + $0x14] sm:$0xf]
        %v821 = vld [vmem:[%s359 + $0x18] sm:$0xf]
        %v822 = vld [vmem:[%s359 + $0x1c] sm:$0xf]
        %v823 = vld [vmem:[%s359 + $0x20] sm:$0xf]
        %v824 = vld [vmem:[%s359 + $0x24] sm:$0xf]
        %v825 = vld [vmem:[%s359 + $0x28] sm:$0xf]
        %v826 = vld [vmem:[%s359 + $0x2c] sm:$0xf]
        %v827 = vld [vmem:[%s359 + $0x30] sm:$0xf]
        %v828 = vld [vmem:[%s359 + $0x34] sm:$0xf]
        %v829 = vld [vmem:[%s359 + $0x38] sm:$0xf]
        %v830 = vld [vmem:[%s359 + $0x3c] sm:$0xf]
        %v831 = vld [vmem:[%s359 + $0x40] sm:$0xf]
        %v832 = vld [vmem:[%s359 + $0x44] sm:$0xf]
        %v833 = vld [vmem:[%s359 + $0x48] sm:$0xf]
        %v834 = vld [vmem:[%s359 + $0x4c] sm:$0xf]
        %v835 = vld [vmem:[%s359 + $0x50] sm:$0xf]
        %v836 = vld [vmem:[%s359 + $0x54] sm:$0xf]
        %v837 = vld [vmem:[%s359 + $0x58] sm:$0xf]
        %v838 = vld [vmem:[%s359 + $0x5c] sm:$0xf]
        %v839 = vld [vmem:[%s359 + $0x60] sm:$0xf]
        %v840 = vld [vmem:[%s359 + $0x64] sm:$0xf]
        %v841 = vld [vmem:[%s359 + $0x68] sm:$0xf]
        %v842 = vld [vmem:[%s359 + $0x6c] sm:$0xf]
        %v843 = vld [vmem:[%s359 + $0x70] sm:$0xf]
        %v844 = vld [vmem:[%s359 + $0x74] sm:$0xf]
        %v845 = vld [vmem:[%s359 + $0x78] sm:$0xf]
        %v846 = vld [vmem:[%s359 + $0x7c] sm:$0xf]
        %v847 = vld [vmem:[%s354] sm:$0xf]
        %v848 = vld [vmem:[%s354 + $0x4] sm:$0xf]
        %v849 = vld [vmem:[%s354 + $0x8] sm:$0xf]
        %v850 = vld [vmem:[%s354 + $0xc] sm:$0xf]
        %v851 = vld [vmem:[%s354 + $0x10] sm:$0xf]
        %v852 = vld [vmem:[%s354 + $0x14] sm:$0xf]
        %v853 = vld [vmem:[%s354 + $0x18] sm:$0xf]
        %v854 = vld [vmem:[%s354 + $0x1c] sm:$0xf]
        %v855 = vld [vmem:[%s354 + $0x20] sm:$0xf]
        %v856 = vld [vmem:[%s354 + $0x24] sm:$0xf]
        %v857 = vld [vmem:[%s354 + $0x28] sm:$0xf]
        %v858 = vld [vmem:[%s354 + $0x2c] sm:$0xf]
        %v859 = vld [vmem:[%s354 + $0x30] sm:$0xf]
        %v860 = vld [vmem:[%s354 + $0x34] sm:$0xf]
        %v861 = vld [vmem:[%s354 + $0x38] sm:$0xf]
        %v862 = vld [vmem:[%s354 + $0x3c] sm:$0xf]
        %v895 = vunpack.c.l.b16 %v815
        %v896 = vunpack.c.l.b16 %v816
        %v897 = vunpack.c.l.b16 %v817
        %v898 = vunpack.c.l.b16 %v818
        %v899 = vunpack.c.l.b16 %v819
        %v900 = vunpack.c.l.b16 %v820
        %v901 = vunpack.c.l.b16 %v821
        %v902 = vunpack.c.l.b16 %v822
        %v903 = vunpack.c.l.b16 %v823
        %v904 = vunpack.c.l.b16 %v824
        %v905 = vunpack.c.l.b16 %v825
        %v906 = vunpack.c.l.b16 %v826
        %v907 = vunpack.c.l.b16 %v827
        %v908 = vunpack.c.l.b16 %v828
        %v909 = vunpack.c.l.b16 %v829
        %v910 = vunpack.c.l.b16 %v830
        %v911 = vunpack.c.l.b16 %v831
        %v912 = vunpack.c.l.b16 %v832
        %v913 = vunpack.c.l.b16 %v833
        %v914 = vunpack.c.l.b16 %v834
        %v915 = vunpack.c.l.b16 %v835
        %v916 = vunpack.c.l.b16 %v836
        %v917 = vunpack.c.l.b16 %v837
        %v918 = vunpack.c.l.b16 %v838
        %v919 = vunpack.c.l.b16 %v839
        %v920 = vunpack.c.l.b16 %v840
        %v921 = vunpack.c.l.b16 %v841
        %v922 = vunpack.c.l.b16 %v842
        %v923 = vunpack.c.l.b16 %v843
        %v924 = vunpack.c.l.b16 %v844
        %v925 = vunpack.c.l.b16 %v845
        %v926 = vunpack.c.l.b16 %v846
        %v927 = vpack.c.b16 %v896, %v895
        %v928 = vpack.c.b16 %v898, %v897
        %v929 = vpack.c.b16 %v900, %v899
        %v930 = vpack.c.b16 %v902, %v901
        %v931 = vpack.c.b16 %v904, %v903
        %v932 = vpack.c.b16 %v906, %v905
        %v933 = vpack.c.b16 %v908, %v907
        %v934 = vpack.c.b16 %v910, %v909
        %v935 = vpack.c.b16 %v912, %v911
        %v936 = vpack.c.b16 %v914, %v913
        %v937 = vpack.c.b16 %v916, %v915
        %v938 = vpack.c.b16 %v918, %v917
        %v939 = vpack.c.b16 %v920, %v919
        %v940 = vpack.c.b16 %v922, %v921
        %v941 = vpack.c.b16 %v924, %v923
        %v942 = vpack.c.b16 %v926, %v925
        %v975 = vunpack.c.l.b16 %v847
        %v976 = vunpack.c.l.b16 %v848
        %v977 = vunpack.c.l.b16 %v849
        %v978 = vunpack.c.l.b16 %v850
        %v979 = vunpack.c.l.b16 %v851
        %v980 = vunpack.c.l.b16 %v852
        %v981 = vunpack.c.l.b16 %v853
        %v982 = vunpack.c.l.b16 %v854
        %v983 = vunpack.c.l.b16 %v855
        %v984 = vunpack.c.l.b16 %v856
        %v985 = vunpack.c.l.b16 %v857
        %v986 = vunpack.c.l.b16 %v858
        %v987 = vunpack.c.l.b16 %v859
        %v988 = vunpack.c.l.b16 %v860
        %v989 = vunpack.c.l.b16 %v861
        %v990 = vunpack.c.l.b16 %v862
        %v991 = vpack.c.b16 %v976, %v975
        %v992 = vpack.c.b16 %v978, %v977
        %v993 = vpack.c.b16 %v980, %v979
        %v994 = vpack.c.b16 %v982, %v981
        %v995 = vpack.c.b16 %v984, %v983
        %v996 = vpack.c.b16 %v986, %v985
        %v997 = vpack.c.b16 %v988, %v987
        %v998 = vpack.c.b16 %v990, %v989
        %1007 = vmatprep.subr.bf16.mxu0 0
        %1008 = vmatpush1.bf16.msra.mxu0 %v991
        %1009 = vmatprep.subr.bf16.mxu0 0
        %1010 = vmatpush1.bf16.msra.mxu0 %v992
        %1011 = vmatprep.subr.bf16.mxu0 0
        %1012 = vmatpush1.bf16.msra.mxu0 %v993
        %1013 = vmatprep.subr.bf16.mxu0 0
        %1014 = vmatpush1.bf16.msra.mxu0 %v994
        %1015 = vmatprep.subr.bf16.mxu0 0
        %1016 = vmatpush1.bf16.msra.mxu0 %v995
        %1017 = vmatprep.subr.bf16.mxu0 0
        %1018 = vmatpush1.bf16.msra.mxu0 %v996
        %1019 = vmatprep.subr.bf16.mxu0 0
        %1020 = vmatpush1.bf16.msra.mxu0 %v997
        %1021 = vmatprep.subr.bf16.mxu0 0
        %1022 = vmatpush1.bf16.msra.mxu0 %v998
        %1023 = vmatprep.subr.bf16.mxu0 0
        %1024 = vmatpush1.bf16.msra.mxu0 0
        %1025 = vmatprep.subr.bf16.mxu0 0
        %1026 = vmatpush1.bf16.msra.mxu0 0
        %1027 = vmatprep.subr.bf16.mxu0 0
        %1028 = vmatpush1.bf16.msra.mxu0 0
        %1029 = vmatprep.subr.bf16.mxu0 0
        %1030 = vmatpush1.bf16.msra.mxu0 0
        %1031 = vmatprep.subr.bf16.mxu0 0
        %1032 = vmatpush1.bf16.msra.mxu0 0
        %1033 = vmatprep.subr.bf16.mxu0 0
        %1034 = vmatpush1.bf16.msra.mxu0 0
        %1035 = vmatprep.subr.bf16.mxu0 0
        %1036 = vmatpush1.bf16.msra.mxu0 0
        %1037 = vmatprep.subr.bf16.mxu0 0
        %1038 = vmatpush1.bf16.msra.mxu0 0
        %1039 = vmatprep.mubr.bf16.mxu0 0
        %1040 = vmatmul.mubr.bf16.gmra.mrb[0].mxu0 %v927
        %v1041 = vpop.f32.mrb[0].mxu0
        %v1042 = vadd.f32 0.0, %v1041
        %v1043 = vpop.f32.mrb[0].mxu0
        %v1044 = vpop.f32.mrb[0].mxu0
        %v1045 = vadd.f32 0.0, %v1044
        %v1046 = vpop.f32.mrb[0].mxu0
        %1047 = vmatprep.mubr.bf16.mxu0 0
        %1048 = vmatmul.mubr.bf16.gmra.mrb[0].mxu0 %v928
        %v1049 = vpop.f32.mrb[0].mxu0
        %v1050 = vadd.f32 0.0, %v1049
        %v1051 = vpop.f32.mrb[0].mxu0
        %v1052 = vpop.f32.mrb[0].mxu0
        %v1053 = vadd.f32 0.0, %v1052
        %v1054 = vpop.f32.mrb[0].mxu0
        %1055 = vmatprep.mubr.bf16.mxu0 0
        %1056 = vmatmul.mubr.bf16.gmra.mrb[0].mxu0 %v929
        %v1057 = vpop.f32.mrb[0].mxu0
        %v1058 = vadd.f32 0.0, %v1057
        %v1059 = vpop.f32.mrb[0].mxu0
        %v1060 = vpop.f32.mrb[0].mxu0
        %v1061 = vadd.f32 0.0, %v1060
        %v1062 = vpop.f32.mrb[0].mxu0
        %1063 = vmatprep.mubr.bf16.mxu0 0
        %1064 = vmatmul.mubr.bf16.gmra.mrb[0].mxu0 %v930
        %v1065 = vpop.f32.mrb[0].mxu0
        %v1066 = vadd.f32 0.0, %v1065
        %v1067 = vpop.f32.mrb[0].mxu0
        %v1068 = vpop.f32.mrb[0].mxu0
        %v1069 = vadd.f32 0.0, %v1068
        %v1070 = vpop.f32.mrb[0].mxu0
        %1071 = vmatprep.mubr.bf16.mxu0 0
        %1072 = vmatmul.mubr.bf16.gmra.mrb[0].mxu0 %v931
        %v1073 = vpop.f32.mrb[0].mxu0
        %v1074 = vadd.f32 0.0, %v1073
        %v1075 = vpop.f32.mrb[0].mxu0
        %v1076 = vpop.f32.mrb[0].mxu0
        %v1077 = vadd.f32 0.0, %v1076
        %v1078 = vpop.f32.mrb[0].mxu0
        %1079 = vmatprep.mubr.bf16.mxu0 0
        %1080 = vmatmul.mubr.bf16.gmra.mrb[0].mxu0 %v932
        %v1081 = vpop.f32.mrb[0].mxu0
        %v1082 = vadd.f32 0.0, %v1081
        %v1083 = vpop.f32.mrb[0].mxu0
        %v1084 = vpop.f32.mrb[0].mxu0
        %v1085 = vadd.f32 0.0, %v1084
        %v1086 = vpop.f32.mrb[0].mxu0
        %1087 = vmatprep.mubr.bf16.mxu0 0
        %1088 = vmatmul.mubr.bf16.gmra.mrb[0].mxu0 %v933
        %v1089 = vpop.f32.mrb[0].mxu0
        %v1090 = vadd.f32 0.0, %v1089
        %v1091 = vpop.f32.mrb[0].mxu0
        %v1092 = vpop.f32.mrb[0].mxu0
        %v1093 = vadd.f32 0.0, %v1092
        %v1094 = vpop.f32.mrb[0].mxu0
        %1095 = vmatprep.mubr.bf16.mxu0 0
        %1096 = vmatmul.mubr.bf16.gmra.mrb[0].mxu0 %v934
        %v1097 = vpop.f32.mrb[0].mxu0
        %v1098 = vadd.f32 0.0, %v1097
        %v1099 = vpop.f32.mrb[0].mxu0
        %v1100 = vpop.f32.mrb[0].mxu0
        %v1101 = vadd.f32 0.0, %v1100
        %v1102 = vpop.f32.mrb[0].mxu0
        %1103 = vmatprep.mubr.bf16.mxu0 0
        %1104 = vmatmul.mubr.bf16.gmra.mrb[0].mxu0 %v935
        %v1105 = vpop.f32.mrb[0].mxu0
        %v1106 = vadd.f32 0.0, %v1105
        %v1107 = vpop.f32.mrb[0].mxu0
        %v1108 = vpop.f32.mrb[0].mxu0
        %v1109 = vadd.f32 0.0, %v1108
        %v1110 = vpop.f32.mrb[0].mxu0
        %1111 = vmatprep.mubr.bf16.mxu0 0
        %1112 = vmatmul.mubr.bf16.gmra.mrb[0].mxu0 %v936
        %v1113 = vpop.f32.mrb[0].mxu0
        %v1114 = vadd.f32 0.0, %v1113
        %v1115 = vpop.f32.mrb[0].mxu0
        %v1116 = vpop.f32.mrb[0].mxu0
        %v1117 = vadd.f32 0.0, %v1116
        %v1118 = vpop.f32.mrb[0].mxu0
        %1119 = vmatprep.mubr.bf16.mxu0 0
        %1120 = vmatmul.mubr.bf16.gmra.mrb[0].mxu0 %v937
        %v1121 = vpop.f32.mrb[0].mxu0
        %v1122 = vadd.f32 0.0, %v1121
        %v1123 = vpop.f32.mrb[0].mxu0
        %v1124 = vpop.f32.mrb[0].mxu0
        %v1125 = vadd.f32 0.0, %v1124
        %v1126 = vpop.f32.mrb[0].mxu0
        %1127 = vmatprep.mubr.bf16.mxu0 0
        %1128 = vmatmul.mubr.bf16.gmra.mrb[0].mxu0 %v938
        %v1129 = vpop.f32.mrb[0].mxu0
        %v1130 = vadd.f32 0.0, %v1129
        %v1131 = vpop.f32.mrb[0].mxu0
        %v1132 = vpop.f32.mrb[0].mxu0
        %v1133 = vadd.f32 0.0, %v1132
        %v1134 = vpop.f32.mrb[0].mxu0
        %1135 = vmatprep.mubr.bf16.mxu0 0
        %1136 = vmatmul.mubr.bf16.gmra.mrb[0].mxu0 %v939
        %v1137 = vpop.f32.mrb[0].mxu0
        %v1138 = vadd.f32 0.0, %v1137
        %v1139 = vpop.f32.mrb[0].mxu0
        %v1140 = vpop.f32.mrb[0].mxu0
        %v1141 = vadd.f32 0.0, %v1140
        %v1142 = vpop.f32.mrb[0].mxu0
        %1143 = vmatprep.mubr.bf16.mxu0 0
        %1144 = vmatmul.mubr.bf16.gmra.mrb[0].mxu0 %v940
        %v1145 = vpop.f32.mrb[0].mxu0
        %v1146 = vadd.f32 0.0, %v1145
        %v1147 = vpop.f32.mrb[0].mxu0
        %v1148 = vpop.f32.mrb[0].mxu0
        %v1149 = vadd.f32 0.0, %v1148
        %v1150 = vpop.f32.mrb[0].mxu0
        %1151 = vmatprep.mubr.bf16.mxu0 0
        %1152 = vmatmul.mubr.bf16.gmra.mrb[0].mxu0 %v941
        %v1153 = vpop.f32.mrb[0].mxu0
        %v1154 = vadd.f32 0.0, %v1153
        %v1155 = vpop.f32.mrb[0].mxu0
        %v1156 = vpop.f32.mrb[0].mxu0
        %v1157 = vadd.f32 0.0, %v1156
        %v1158 = vpop.f32.mrb[0].mxu0
        %1159 = vmatprep.mubr.bf16.mxu0 0
        %1160 = vmatmul.mubr.bf16.gmra.mrb[0].mxu0 %v942
        %v1161 = vpop.f32.mrb[0].mxu0
        %v1162 = vadd.f32 0.0, %v1161
        %v1163 = vpop.f32.mrb[0].mxu0
        %v1164 = vpop.f32.mrb[0].mxu0
        %v1165 = vadd.f32 0.0, %v1164
        %v1166 = vpop.f32.mrb[0].mxu0
        %1167 = vdwg.mxu0
        %vm1168 = vcmask 523264
        %v1169 = vsel %vm1168, %v1042, -inf
        %v1170 = vsel %vm1168, %v1045, -inf
        %v1171 = vmax.f32 %v1169, %v1170
        %v1172 = vrot.slane %v1171, 4
        %v1173 = vmax.f32 %v1171, %v1172
        %v1174 = vrot.slane %v1173, 2
        %v1175 = vmax.f32 %v1173, %v1174
        %v1176 = vrot.slane %v1175, 1
        %v1177 = vmax.f32 %v1175, %v1176
        %v1178 = vsel %vm1168, %v1050, -inf
        %v1179 = vsel %vm1168, %v1053, -inf
        %v1180 = vmax.f32 %v1178, %v1179
        %v1181 = vrot.slane %v1180, 4
        %v1182 = vmax.f32 %v1180, %v1181
        %v1183 = vrot.slane %v1182, 2
        %v1184 = vmax.f32 %v1182, %v1183
        %v1185 = vrot.slane %v1184, 1
        %v1186 = vmax.f32 %v1184, %v1185
        %v1187 = vsel %vm1168, %v1058, -inf
        %v1188 = vsel %vm1168, %v1061, -inf
        %v1189 = vmax.f32 %v1187, %v1188
        %v1190 = vrot.slane %v1189, 4
        %v1191 = vmax.f32 %v1189, %v1190
        %v1192 = vrot.slane %v1191, 2
        %v1193 = vmax.f32 %v1191, %v1192
        %v1194 = vrot.slane %v1193, 1
        %v1195 = vmax.f32 %v1193, %v1194
        %v1196 = vsel %vm1168, %v1066, -inf
        %v1197 = vsel %vm1168, %v1069, -inf
        %v1198 = vmax.f32 %v1196, %v1197
        %v1199 = vrot.slane %v1198, 4
        %v1200 = vmax.f32 %v1198, %v1199
        %v1201 = vrot.slane %v1200, 2
        %v1202 = vmax.f32 %v1200, %v1201
        %v1203 = vrot.slane %v1202, 1
        %v1204 = vmax.f32 %v1202, %v1203
        %v1205 = vsel %vm1168, %v1074, -inf
        %v1206 = vsel %vm1168, %v1077, -inf
        %v1207 = vmax.f32 %v1205, %v1206
        %v1208 = vrot.slane %v1207, 4
        %v1209 = vmax.f32 %v1207, %v1208
        %v1210 = vrot.slane %v1209, 2
        %v1211 = vmax.f32 %v1209, %v1210
        %v1212 = vrot.slane %v1211, 1
        %v1213 = vmax.f32 %v1211, %v1212
        %v1214 = vsel %vm1168, %v1082, -inf
        %v1215 = vsel %vm1168, %v1085, -inf
        %v1216 = vmax.f32 %v1214, %v1215
        %v1217 = vrot.slane %v1216, 4
        %v1218 = vmax.f32 %v1216, %v1217
        %v1219 = vrot.slane %v1218, 2
        %v1220 = vmax.f32 %v1218, %v1219
        %v1221 = vrot.slane %v1220, 1
        %v1222 = vmax.f32 %v1220, %v1221
        %v1223 = vsel %vm1168, %v1090, -inf
        %v1224 = vsel %vm1168, %v1093, -inf
        %v1225 = vmax.f32 %v1223, %v1224
        %v1226 = vrot.slane %v1225, 4
        %v1227 = vmax.f32 %v1225, %v1226
        %v1228 = vrot.slane %v1227, 2
        %v1229 = vmax.f32 %v1227, %v1228
        %v1230 = vrot.slane %v1229, 1
        %v1231 = vmax.f32 %v1229, %v1230
        %v1232 = vsel %vm1168, %v1098, -inf
        %v1233 = vsel %vm1168, %v1101, -inf
        %v1234 = vmax.f32 %v1232, %v1233
        %v1235 = vrot.slane %v1234, 4
        %v1236 = vmax.f32 %v1234, %v1235
        %v1237 = vrot.slane %v1236, 2
        %v1238 = vmax.f32 %v1236, %v1237
        %v1239 = vrot.slane %v1238, 1
        %v1240 = vmax.f32 %v1238, %v1239
        %v1241 = vsel %vm1168, %v1106, -inf
        %v1242 = vsel %vm1168, %v1109, -inf
        %v1243 = vmax.f32 %v1241, %v1242
        %v1244 = vrot.slane %v1243, 4
        %v1245 = vmax.f32 %v1243, %v1244
        %v1246 = vrot.slane %v1245, 2
        %v1247 = vmax.f32 %v1245, %v1246
        %v1248 = vrot.slane %v1247, 1
        %v1249 = vmax.f32 %v1247, %v1248
        %v1250 = vsel %vm1168, %v1114, -inf
        %v1251 = vsel %vm1168, %v1117, -inf
        %v1252 = vmax.f32 %v1250, %v1251
        %v1253 = vrot.slane %v1252, 4
        %v1254 = vmax.f32 %v1252, %v1253
        %v1255 = vrot.slane %v1254, 2
        %v1256 = vmax.f32 %v1254, %v1255
        %v1257 = vrot.slane %v1256, 1
        %v1258 = vmax.f32 %v1256, %v1257
        %v1259 = vsel %vm1168, %v1122, -inf
        %v1260 = vsel %vm1168, %v1125, -inf
        %v1261 = vmax.f32 %v1259, %v1260
        %v1262 = vrot.slane %v1261, 4
        %v1263 = vmax.f32 %v1261, %v1262
        %v1264 = vrot.slane %v1263, 2
        %v1265 = vmax.f32 %v1263, %v1264
        %v1266 = vrot.slane %v1265, 1
        %v1267 = vmax.f32 %v1265, %v1266
        %v1268 = vsel %vm1168, %v1130, -inf
        %v1269 = vsel %vm1168, %v1133, -inf
        %v1270 = vmax.f32 %v1268, %v1269
        %v1271 = vrot.slane %v1270, 4
        %v1272 = vmax.f32 %v1270, %v1271
        %v1273 = vrot.slane %v1272, 2
        %v1274 = vmax.f32 %v1272, %v1273
        %v1275 = vrot.slane %v1274, 1
        %v1276 = vmax.f32 %v1274, %v1275
        %v1277 = vsel %vm1168, %v1138, -inf
        %v1278 = vsel %vm1168, %v1141, -inf
        %v1279 = vmax.f32 %v1277, %v1278
        %v1280 = vrot.slane %v1279, 4
        %v1281 = vmax.f32 %v1279, %v1280
        %v1282 = vrot.slane %v1281, 2
        %v1283 = vmax.f32 %v1281, %v1282
        %v1284 = vrot.slane %v1283, 1
        %v1285 = vmax.f32 %v1283, %v1284
        %v1286 = vsel %vm1168, %v1146, -inf
        %v1287 = vsel %vm1168, %v1149, -inf
        %v1288 = vmax.f32 %v1286, %v1287
        %v1289 = vrot.slane %v1288, 4
        %v1290 = vmax.f32 %v1288, %v1289
        %v1291 = vrot.slane %v1290, 2
        %v1292 = vmax.f32 %v1290, %v1291
        %v1293 = vrot.slane %v1292, 1
        %v1294 = vmax.f32 %v1292, %v1293
        %v1295 = vsel %vm1168, %v1154, -inf
        %v1296 = vsel %vm1168, %v1157, -inf
        %v1297 = vmax.f32 %v1295, %v1296
        %v1298 = vrot.slane %v1297, 4
        %v1299 = vmax.f32 %v1297, %v1298
        %v1300 = vrot.slane %v1299, 2
        %v1301 = vmax.f32 %v1299, %v1300
        %v1302 = vrot.slane %v1301, 1
        %v1303 = vmax.f32 %v1301, %v1302
        %v1304 = vsel %vm1168, %v1162, -inf
        %v1305 = vsel %vm1168, %v1165, -inf
        %v1306 = vmax.f32 %v1304, %v1305
        %v1307 = vrot.slane %v1306, 4
        %v1308 = vmax.f32 %v1306, %v1307
        %v1309 = vrot.slane %v1308, 2
        %v1310 = vmax.f32 %v1308, %v1309
        %v1311 = vrot.slane %v1310, 1
        %v1312 = vmax.f32 %v1310, %v1311
        %v1313 = vld [vmem:[%s5] sm:$0xff]
        %v1314 = vld [vmem:[%s5 + $0x8] sm:$0xff]
        %v1315 = vld [vmem:[%s5 + $0x10] sm:$0xff]
        %v1316 = vld [vmem:[%s5 + $0x18] sm:$0xff]
        %v1317 = vld [vmem:[%s5 + $0x20] sm:$0xff]
        %v1318 = vld [vmem:[%s5 + $0x28] sm:$0xff]
        %v1319 = vld [vmem:[%s5 + $0x30] sm:$0xff]
        %v1320 = vld [vmem:[%s5 + $0x38] sm:$0xff]
        %v1337 = vsel %vm720, %v1186, %v1177
        %v1338 = vsel %vm722, %v1195, %v1337
        %v1339 = vsel %vm724, %v1204, %v1338
        %v1340 = vsel %vm726, %v1213, %v1339
        %v1341 = vsel %vm728, %v1222, %v1340
        %v1342 = vsel %vm730, %v1231, %v1341
        %v1343 = vsel %vm732, %v1240, %v1342
        %v1344 = vsel %vm720, %v1258, %v1249
        %v1345 = vsel %vm722, %v1267, %v1344
        %v1346 = vsel %vm724, %v1276, %v1345
        %v1347 = vsel %vm726, %v1285, %v1346
        %v1348 = vsel %vm728, %v1294, %v1347
        %v1349 = vsel %vm730, %v1303, %v1348
        %v1350 = vsel %vm732, %v1312, %v1349
        %v1351 = vsel %vm1168, %v1343, 0
        %v1353 = vsel %vm1168, %v1350, 0
        %1355 = vmatprep.subr.mxu0 0.0
        %1356 = vmatpush1.msra.mxu0 %v1313
        %1357 = vmatprep.subr.mxu0 0.0
        %1358 = vmatpush1.msra.mxu0 %v1314
        %1359 = vmatprep.subr.mxu0 0.0
        %1360 = vmatpush1.msra.mxu0 %v1315
        %1361 = vmatprep.subr.mxu0 0.0
        %1362 = vmatpush1.msra.mxu0 %v1316
        %1363 = vmatprep.subr.mxu0 0.0
        %1364 = vmatpush1.msra.mxu0 %v1317
        %1365 = vmatprep.subr.mxu0 0.0
        %1366 = vmatpush1.msra.mxu0 %v1318
        %1367 = vmatprep.subr.mxu0 0.0
        %1368 = vmatpush1.msra.mxu0 %v1319
        %1369 = vmatprep.subr.mxu0 0.0
        %1370 = vmatpush1.msra.mxu0 %v1320
        %1371 = vmatprep.subr.mxu0 0.0
        %1372 = vmatpush1.msra.mxu0 0.0
        %1373 = vmatprep.subr.mxu0 0.0
        %1374 = vmatpush1.msra.mxu0 0.0
        %1375 = vmatprep.subr.mxu0 0.0
        %1376 = vmatpush1.msra.mxu0 0.0
        %1377 = vmatprep.subr.mxu0 0.0
        %1378 = vmatpush1.msra.mxu0 0.0
        %1379 = vmatprep.subr.mxu0 0.0
        %1380 = vmatpush1.msra.mxu0 0.0
        %1381 = vmatprep.subr.mxu0 0.0
        %1382 = vmatpush1.msra.mxu0 0.0
        %1383 = vmatprep.subr.mxu0 0.0
        %1384 = vmatpush1.msra.mxu0 0.0
        %1385 = vmatprep.subr.mxu0 0.0
        %1386 = vmatpush1.msra.mxu0 0.0
        %1387 = vmatprep.subr.mxu0 0.0
        %1388 = vmatpush1.msra.mxu0 0.0
        %1389 = vmatprep.subr.mxu0 0.0
        %1390 = vmatpush1.msra.mxu0 0.0
        %1391 = vmatprep.subr.mxu0 0.0
        %1392 = vmatpush1.msra.mxu0 0.0
        %1393 = vmatprep.subr.mxu0 0.0
        %1394 = vmatpush1.msra.mxu0 0.0
        %1395 = vmatprep.subr.mxu0 0.0
        %1396 = vmatpush1.msra.mxu0 0.0
        %1397 = vmatprep.subr.mxu0 0.0
        %1398 = vmatpush1.msra.mxu0 0.0
        %1399 = vmatprep.subr.mxu0 0.0
        %1400 = vmatpush1.msra.mxu0 0.0
        %1401 = vmatprep.subr.mxu0 0.0
        %1402 = vmatpush1.msra.mxu0 0.0
        %1403 = vmatprep.subr.mxu0 0.0
        %1404 = vmatpush1.msra.mxu0 0.0
        %1405 = vmatprep.subr.mxu0 0.0
        %1406 = vmatpush1.msra.mxu0 0.0
        %1407 = vmatprep.subr.mxu0 0.0
        %1408 = vmatpush1.msra.mxu0 0.0
        %1409 = vmatprep.subr.mxu0 0.0
        %1410 = vmatpush1.msra.mxu0 0.0
        %1411 = vmatprep.subr.mxu0 0.0
        %1412 = vmatpush1.msra.mxu0 0.0
        %1413 = vmatprep.subr.mxu0 0.0
        %1414 = vmatpush1.msra.mxu0 0.0
        %1415 = vmatprep.subr.mxu0 0.0
        %1416 = vmatpush1.msra.mxu0 0.0
        %1417 = vmatprep.subr.mxu0 0.0
        %1418 = vmatpush1.msra.mxu0 0.0
        %1419 = vmatprep.mubr.f32.mxu0 0.0
        %1420 = vmatmul.mubr.f32.gmra.mrb[0].mxu0 %v1351
        %v1421 = vpop.f32.mrb[0].mxu0
        %v1422 = vadd.f32 0.0, %v1421
        %v1423 = vpop.f32.mrb[0].mxu0
        %1424 = vmatprep.mubr.f32.mxu0 0.0
        %1425 = vmatmul.mubr.f32.gmra.mrb[0].mxu0 %v1353
        %v1426 = vpop.f32.mrb[0].mxu0
        %v1427 = vadd.f32 0.0, %v1426
        %v1428 = vpop.f32.mrb[0].mxu0
        %1429 = vdwg.mxu0
        %vm1430 = vcmask 64512
        %1431 = vst.msk [vmem:[%s373] sm:$0xff] %vm1430, %v1422
        %1432 = vst.msk [vmem:[%s373 + $0x8] sm:$0xff] %vm1430, %v1427
        %s1433 = sand.u32 %s190, 1
        %s1434 = scalar_lea.sflag [#allocation3], %s1433
        %s1435 = sand.u32 %s190, 1
        %s1436 = smul.addr %s1435, 8
        %s1437 = scalar_lea.vmem [#allocation2], %s1436
        %p1438 = scmp.lt.s32.totalorder %s26, 1
        %s1439 = scalar_select %p1438, %s26, 1
        %p1440 = scmp.lt.s32.totalorder %s27, 0
        %s1441 = scalar_select %p1440, %s27, 0
        %s1442 = smul.addr %s1441, 2
        %s1443 = smul.addr %s1439, 2
        %s1444 = sadd.s32 %s1442, %s1443
        %s1445 = smul.addr %s1444, 8
        %s1446 = scalar_lea.vmem %s7, %s1445
        // Predicated region
        $region45: #{tpu_custom_call.1} parent=43 // pred_check
          %p1447 = pneg %p200
        $region46: #{tpu_custom_call.1} parent=43 // pred_check_branch
          %1449 = sbr.rel (%p1447) target = $region48
        $region47: #{tpu_custom_call.1} parent=43 // pred_region
          %s1451 = ssub.s32 128, 128
          %1452 = vsyncadd %s1434, %s1451
          %s1453 = sadd.s32 %s27, %s26
          %s1454 = smul.addr %s1453, 128
          %s1455 = scalar_lea.hbm %s6, %s1454
          %s1457 = sshll.u32 %s1437, 4
          %s1458 = int_to_ptr.vmem [resolvable:$true] %s1457
          %1460 = dma.vmem_to_hbm [thread:$0]  %s1458, 128, %s1455, %s1434
        $region48: #{tpu_custom_call.1} parent=43 // pred_fallthru
          _
        // Predicated region
        $region49: #{tpu_custom_call.1} parent=43 // pred_check
          %p1461 = pneg %p228
        $region50: #{tpu_custom_call.1} parent=43 // pred_check_branch
          %1463 = sbr.rel (%p1461) target = $region52
        $region51: #{tpu_custom_call.1} parent=43 // pred_region
          _
        $region52: #{tpu_custom_call.1} parent=43 // pred_fallthru
          _
      $region44: #{tpu_custom_call.1} parent=5 // pred_fallthru
        _
      %p1464 = scmp.le.s32.totalorder 2, %s17
      // Predicated region
      $region53: #{tpu_custom_call.1} parent=5 // pred_check
        %p1465 = pneg %p1464
      $region54: #{tpu_custom_call.1} parent=5 // pred_check_branch
        %1467 = sbr.rel (%p1465) target = $region56
      $region55: #{tpu_custom_call.1} parent=5 // pred_region
        %s1468 = ssub.s32 %s17, 2
        // Predicated region
        $region57: #{tpu_custom_call.1} parent=55 // pred_check
          %p1469 = pneg %p206
        $region58: #{tpu_custom_call.1} parent=55 // pred_check_branch
          %1471 = sbr.rel (%p1469) target = $region60
        $region59: #{tpu_custom_call.1} parent=55 // pred_region
          %s1472 = sand.u32 %s191, 1
          %s1473 = scalar_lea.sflag [#allocation3], %s1472
          %s1474 = sand.u32 %s191, 1
          %s1475 = smul.addr %s1474, 8
          %s1476 = scalar_lea.vmem [#allocation2], %s1475
          %1477 = dma.done %s1473, 128
        $region60: #{tpu_custom_call.1} parent=55 // pred_fallthru
          _
        // Predicated region
        $region61: #{tpu_custom_call.1} parent=55 // pred_check
          %p1478 = pneg %p234
        $region62: #{tpu_custom_call.1} parent=55 // pred_check_branch
          %1480 = sbr.rel (%p1478) target = $region64
        $region63: #{tpu_custom_call.1} parent=55 // pred_region
          %p1481 = scmp.lt.s32.totalorder %s28, 1
          %s1482 = scalar_select %p1481, %s28, 1
          %p1483 = scmp.lt.s32.totalorder %s29, 0
          %s1484 = scalar_select %p1483, %s29, 0
          %s1485 = smul.addr %s1484, 2
          %s1486 = smul.addr %s1482, 2
          %s1487 = sadd.s32 %s1485, %s1486
          %s1488 = smul.addr %s1487, 8
          %s1489 = scalar_lea.vmem %s7, %s1488
        $region64: #{tpu_custom_call.1} parent=55 // pred_fallthru
          _
      $region56: #{tpu_custom_call.1} parent=5 // pred_fallthru
        _
    $region6: #{tpu_custom_call.1} parent=1 // loop_footer
      %s21 = sadd.s32 1, %s17
    $region7: #{tpu_custom_call.1} parent=1 // loop_footer_branch
      %16 = sbr.rel target = $region3
    $region8: #{tpu_custom_call.1} parent=1 // loop_exit
      _
    %1490 = vsyncpa [#allocation3], 1
    %s1491 = scalar_lea.sflag [#allocation3], 1
    %1492 = vsyncpa %s1491, 1

</llo_original>
